<compile_context>
chip_gen: v6e
topology: v6e:2x2x1
jax: 0.10.0
libtpu: 0.0.40
codegen_flags: <defaults>
</compile_context>

<pallas_src>
import functools

import jax
import jax.numpy as jnp
from jax.experimental import pallas as pl
from jax.experimental.pallas import tpu as pltpu

EPS = 1e-5  # PyTorch BatchNorm1d default eps


# --------------------------------------------------------------------------- #
# Kernel
# --------------------------------------------------------------------------- #
def resblock_kernel(x_ref,
                    s1_ref, t1_ref, w1_ref,
                    s2_ref, t2_ref, w2_ref,
                    cb2_ref,
                    out_ref, *, seq_len):
    # x_ref: (rows, Cp) where rows is a multiple of seq_len (whole sequences).
    x = x_ref[...].astype(jnp.float32)
    rows, cp = x.shape

    # Grid-step-invariant boundary masks for the 'same' (pad=1) conv, as
    # (rows, 1) f32 multipliers (cheap FMA instead of select + zeros operand).
    t_idx = jax.lax.broadcasted_iota(jnp.int32, (rows, 1), 0) % seq_len
    mask_first = (t_idx != 0).astype(jnp.float32)
    mask_last = (t_idx != (seq_len - 1)).astype(jnp.float32)

    def bn_relu(h, s_ref, t_ref):
        # BatchNorm folded to per-channel scale/shift in the wrapper.
        # TODO(synk): nn.Dropout is identity in eval mode; training-mode dropout
        # (RNG masking) is not implemented.
        return jnp.maximum(h * s_ref[...] + t_ref[...], 0.0)

    def conv(h, w_ref):
        # Shifted taps via XLU roll + boundary mask multiply (zero 'same' pad).
        h_prev = (mask_first * pltpu.roll(h, shift=1, axis=0)).astype(jnp.bfloat16)
        h_next = (mask_last * pltpu.roll(h, shift=rows - 1, axis=0)).astype(jnp.bfloat16)
        h_mid = h.astype(jnp.bfloat16)
        # Three accumulated MXU dots; bf16 operands, f32 accumulation.
        acc = jnp.dot(h_prev, w_ref[0:cp, :], preferred_element_type=jnp.float32)
        acc = acc + jnp.dot(h_mid, w_ref[cp:2 * cp, :], preferred_element_type=jnp.float32)
        acc = acc + jnp.dot(h_next, w_ref[2 * cp:3 * cp, :], preferred_element_type=jnp.float32)
        return acc

    h = bn_relu(x, s1_ref, t1_ref)
    h = conv(h, w1_ref)
    h = bn_relu(h, s2_ref, t2_ref)          # conv1 bias folded into BN2 shift
    h = conv(h, w2_ref)
    out_ref[...] = (x + h + cb2_ref[...]).astype(out_ref.dtype)


# --------------------------------------------------------------------------- #
# Wrapper helpers
# --------------------------------------------------------------------------- #
def _round_up(v, m):
    return ((v + m - 1) // m) * m


def _vmem_capacity_bytes():
    try:
        return int(pltpu.get_tpu_info().vmem_capacity_bytes)
    except Exception:
        return 64 * 1024 * 1024  # conservative: v7x per-TensorCore physical VMEM


def _pick_block_rows(B, T, max_rows):
    """Largest whole-sequence row block <= max_rows, preferring >=2 grid steps."""
    R = B * T
    divisors = [d for d in range(1, B + 1) if B % d == 0]
    valid = [d for d in divisors if (d * T) % 8 == 0 or d * T == R]
    if not valid:
        valid = [B]
    fitting = [d for d in valid if d * T <= max_rows] or [min(valid)]
    multi = [d for d in fitting if B // d >= 2]
    return max(multi) if multi else max(fitting)


def _build_call(R, rows, Cp, out_dtype, kparams, seq_len, vmem_limit,
                single_buffer_consts):
    def const_spec(p):
        idx = lambda i, _nd=p.ndim: (0,) * _nd
        if single_buffer_consts:
            # Block index never changes across the grid: single-buffer it.
            return pl.BlockSpec(p.shape, idx, pipeline_mode=pl.Buffered(1))
        return pl.BlockSpec(p.shape, idx)

    flops = 2 * 3 * 2 * R * Cp * Cp  # two convs x three taps x (2*M*K*N)
    bytes_accessed = (4 * 2 * R * Cp
                      + sum(int(p.size) * p.dtype.itemsize for p in kparams))
    cost = pl.CostEstimate(flops=flops, transcendentals=0,
                           bytes_accessed=bytes_accessed)

    return pl.pallas_call(
        functools.partial(resblock_kernel, seq_len=seq_len),
        out_shape=jax.ShapeDtypeStruct((R, Cp), out_dtype),
        grid=(R // rows,),
        in_specs=[pl.BlockSpec((rows, Cp), lambda i: (i, 0))]
                 + [const_spec(p) for p in kparams],
        out_specs=pl.BlockSpec((rows, Cp), lambda i: (i, 0)),
        compiler_params=pltpu.CompilerParams(
            dimension_semantics=("parallel",),
            vmem_limit_bytes=int(vmem_limit)),
        cost_estimate=cost,
    )


def resblock_forward(x, kparams):
    B, T, C = x.shape
    Cp = kparams[0].shape[-1]          # lane-padded channel count
    R = B * T

    if Cp != C:
        x = jnp.pad(x, ((0, 0), (0, 0), (0, Cp - C)))
    x2 = x.reshape(R, Cp)

    # --- VMEM-aware block sizing ------------------------------------------ #
    vmem_cap = _vmem_capacity_bytes()
    budget = min(int(vmem_cap * 0.75), 96 * 1024 * 1024)
    weight_bytes = sum(int(p.size) * p.dtype.itemsize for p in kparams)
    act_budget = max(budget - 2 * weight_bytes, 4 * 1024 * 1024)
    # 2x double-buffered in + 2x out + live f32/bf16 temporaries per row.
    per_row_bytes = Cp * 4 * 12
    max_rows = max(T, act_budget // per_row_bytes)

    bpb = _pick_block_rows(B, T, max_rows)
    rows = bpb * T
    grid_steps = R // rows

    footprint = rows * per_row_bytes + 2 * weight_bytes
    vmem_limit = min(max(footprint * 2, 32 * 1024 * 1024), budget)

    try:
        call = _build_call(R, rows, Cp, x.dtype, kparams, T, vmem_limit, True)
        out2 = jax.block_until_ready(call(x2, *kparams))
    except Exception:
        # Fallback if pipeline_mode=pl.Buffered(1) is unsupported in this jax.
        call = _build_call(R, rows, Cp, x.dtype, kparams, T, vmem_limit, False)
        out2 = jax.block_until_ready(call(x2, *kparams))

    del grid_steps
    return out2.reshape(B, T, Cp)[:, :, :C]


# --------------------------------------------------------------------------- #
# Parameter construction (PyTorch-layout raw params) and folding
# --------------------------------------------------------------------------- #
def make_raw_params(key, C):
    ks = jax.random.split(key, 12)

    def bn(kg, kb, km, kv):
        gamma = 1.0 + 0.1 * jax.random.normal(kg, (C,), jnp.float32)
        beta = 0.1 * jax.random.normal(kb, (C,), jnp.float32)
        mean = 0.1 * jax.random.normal(km, (C,), jnp.float32)
        var = 0.5 + 0.5 * jnp.abs(jax.random.normal(kv, (C,), jnp.float32))
        return gamma, beta, mean, var

    g1, b1, m1, v1 = bn(ks[0], ks[1], ks[2], ks[3])
    g2, b2, m2, v2 = bn(ks[4], ks[5], ks[6], ks[7])
    # PyTorch Conv1d weight layout: (C_out, C_in, K=3)
    w1 = 0.1 * jax.random.normal(ks[8], (C, C, 3), jnp.float32)
    w2 = 0.1 * jax.random.normal(ks[9], (C, C, 3), jnp.float32)
    cb1 = 0.1 * jax.random.normal(ks[10], (C,), jnp.float32)
    cb2 = 0.1 * jax.random.normal(ks[11], (C,), jnp.float32)
    return (g1, b1, m1, v1, w1, cb1, g2, b2, m2, v2, w2, cb2)


def fold_params(raw, c_pad):
    (g1, b1, m1, v1, w1, cb1, g2, b2, m2, v2, w2, cb2) = raw
    C = g1.shape[0]

    s1 = g1 * jax.lax.rsqrt(v1 + EPS)
    t1 = b1 - m1 * s1
    s2 = g2 * jax.lax.rsqrt(v2 + EPS)
    t2 = (b2 - m2 * s2) + cb1 * s2        # fold conv1 bias into BN2 shift

    def pad_vec(v):                        # (C,) -> (1, Cp), zero-padded
        return jnp.pad(v, (0, c_pad - C)).reshape(1, c_pad)

    def reweight(w):                       # (Cout, Cin, K) -> (K*Cp, Cp) bf16
        k = w.shape[-1]
        wr = jnp.transpose(w, (2, 1, 0))                       # (K, Cin, Cout)
        wr = jnp.pad(wr, ((0, 0), (0, c_pad - C), (0, c_pad - C)))
        return wr.reshape(k * c_pad, c_pad).astype(jnp.bfloat16)

    return (pad_vec(s1), pad_vec(t1), reweight(w1),
            pad_vec(s2), pad_vec(t2), reweight(w2),
            pad_vec(cb2))


# --------------------------------------------------------------------------- #
# Pure-JAX reference of the PyTorch module (eval mode), layout (B, T, C)
# --------------------------------------------------------------------------- #
def reference_forward(x, raw):
    (g1, b1, m1, v1, w1, cb1, g2, b2, m2, v2, w2, cb2) = raw

    def bn_relu(h, g, b, m, v):
        return jnp.maximum((h - m) * (g / jnp.sqrt(v + EPS)) + b, 0.0)

    def conv(h, w, bias):                  # h: (B, T, C); w: (Cout, Cin, 3)
        T = h.shape[1]
        hp = jnp.pad(h, ((0, 0), (1, 1), (0, 0)))
        out = bias[None, None, :]
        for k in range(3):
            out = out + jnp.einsum("btc,dc->btd", hp[:, k:k + T, :], w[:, :, k])
        return out

    h = bn_relu(x, g1, b1, m1, v1)
    h = conv(h, w1, cb1)
    h = bn_relu(h, g2, b2, m2, v2)
    h = conv(h, w2, cb2)
    return x + h


if __name__ == "__main__":
    B, T, C = 2, 16, 32  # batch, seq_len, hidden_dim
    key = jax.random.PRNGKey(0)
    kx, kp = jax.random.split(key)
    x = jax.random.normal(kx, (B, T, C), jnp.float32)

    raw_params = make_raw_params(kp, C)
    Cp = _round_up(C, 128)                 # lane-dense channel padding
    kernel_params = fold_params(raw_params, Cp)

    out = jax.block_until_ready(resblock_forward(x, kernel_params))

    ref = reference_forward(x, raw_params)
    max_err = float(jnp.max(jnp.abs(out - ref)))
    assert out.shape == (B, T, C)
    # bf16 MXU operands -> slightly loosened tolerance vs the f32 reference.
    assert max_err < 5e-2, f"mismatch vs reference: {max_err}"
    print("KERNEL_OK")
</pallas_src>

<mosaic_0001>
module attributes {stable_mosaic.version = 11 : i64} {
  func.func @resblock_kernel(%arg0: i32, %arg1: memref<16x128xf32, #tpu.memory_space<vmem>>, %arg2: memref<1x128xf32, #tpu.memory_space<vmem>>, %arg3: memref<1x128xf32, #tpu.memory_space<vmem>>, %arg4: memref<384x128xbf16, #tpu.memory_space<vmem>>, %arg5: memref<1x128xf32, #tpu.memory_space<vmem>>, %arg6: memref<1x128xf32, #tpu.memory_space<vmem>>, %arg7: memref<384x128xbf16, #tpu.memory_space<vmem>>, %arg8: memref<1x128xf32, #tpu.memory_space<vmem>>, %arg9: memref<16x128xf32, #tpu.memory_space<vmem>>) attributes {dimension_semantics = [#tpu.dimension_semantics<parallel>], iteration_bounds = array<i64: 2>, scalar_prefetch = 0 : i64, scratch_operands = 0 : i64, tpu.core_type = #tpu.core_type<tc>, window_params = [{transform_indices = @transform_0, window_bounds = array<i64: 16, 128>}, {pipeline_mode = #tpu.pipeline_mode<synchronous>, transform_indices = @transform_1, window_bounds = array<i64: 1, 128>}, {pipeline_mode = #tpu.pipeline_mode<synchronous>, transform_indices = @transform_2, window_bounds = array<i64: 1, 128>}, {pipeline_mode = #tpu.pipeline_mode<synchronous>, transform_indices = @transform_3, window_bounds = array<i64: 384, 128>}, {pipeline_mode = #tpu.pipeline_mode<synchronous>, transform_indices = @transform_4, window_bounds = array<i64: 1, 128>}, {pipeline_mode = #tpu.pipeline_mode<synchronous>, transform_indices = @transform_5, window_bounds = array<i64: 1, 128>}, {pipeline_mode = #tpu.pipeline_mode<synchronous>, transform_indices = @transform_6, window_bounds = array<i64: 384, 128>}, {pipeline_mode = #tpu.pipeline_mode<synchronous>, transform_indices = @transform_7, window_bounds = array<i64: 1, 128>}, {transform_indices = @transform_8, window_bounds = array<i64: 16, 128>}]} {
    %c0 = arith.constant 0 : index
    %c0_0 = arith.constant 0 : index
    %0 = vector.load %arg1[%c0, %c0_0] : memref<16x128xf32, #tpu.memory_space<vmem>>, vector<16x128xf32>
    %1 = tpu.iota {dimensions = array<i32: 0>} : vector<16x1xi32>
    %c16_i32 = arith.constant 16 : i32
    %c0_i32 = arith.constant 0 : i32
    %2 = arith.cmpi eq, %c16_i32, %c0_i32 : i32
    %c1_i32 = arith.constant 1 : i32
    %3 = arith.select %2, %c1_i32, %c16_i32 : i32
    %4 = vector.broadcast %3 : i32 to vector<16x1xi32>
    %5 = arith.remsi %1, %4 : vector<16x1xi32>
    %c0_i32_1 = arith.constant 0 : i32
    %6 = vector.broadcast %c0_i32_1 : i32 to vector<16x1xi32>
    %7 = arith.cmpi ne, %5, %6 : vector<16x1xi32>
    %c0_i32_2 = arith.constant 0 : i32
    %8 = vector.broadcast %c0_i32_2 : i32 to vector<16x1xi32>
    %9 = arith.cmpi slt, %5, %8 : vector<16x1xi32>
    %c0_i32_3 = arith.constant 0 : i32
    %10 = arith.cmpi slt, %3, %c0_i32_3 : i32
    %11 = vector.broadcast %10 : i1 to vector<16x1xi1>
    %12 = vector.broadcast %11 : vector<16x1xi1> to vector<16x1xi1>
    %13 = arith.xori %9, %12 : vector<16x1xi1>
    %14 = arith.andi %13, %7 : vector<16x1xi1>
    %15 = vector.broadcast %3 : i32 to vector<16x1xi32>
    %16 = arith.addi %5, %15 : vector<16x1xi32>
    %17 = arith.select %14, %16, %5 : vector<16x1xi1>, vector<16x1xi32>
    %c0_i32_4 = arith.constant 0 : i32
    %18 = vector.broadcast %c0_i32_4 : i32 to vector<16x1xi32>
    %19 = arith.cmpi ne, %17, %18 : vector<16x1xi32>
    %20 = arith.extui %19 : vector<16x1xi1> to vector<16x1xi32>
    %21 = arith.sitofp %20 : vector<16x1xi32> to vector<16x1xf32>
    %c15_i32 = arith.constant 15 : i32
    %22 = vector.broadcast %c15_i32 : i32 to vector<16x1xi32>
    %23 = arith.cmpi ne, %17, %22 : vector<16x1xi32>
    %24 = arith.extui %23 : vector<16x1xi1> to vector<16x1xi32>
    %25 = arith.sitofp %24 : vector<16x1xi32> to vector<16x1xf32>
    %c0_5 = arith.constant 0 : index
    %c0_6 = arith.constant 0 : index
    %26 = vector.load %arg2[%c0_5, %c0_6] : memref<1x128xf32, #tpu.memory_space<vmem>>, vector<1x128xf32>
    %27 = vector.broadcast %26 : vector<1x128xf32> to vector<16x128xf32>
    %28 = arith.mulf %0, %27 : vector<16x128xf32>
    %c0_7 = arith.constant 0 : index
    %c0_8 = arith.constant 0 : index
    %29 = vector.load %arg3[%c0_7, %c0_8] : memref<1x128xf32, #tpu.memory_space<vmem>>, vector<1x128xf32>
    %30 = vector.broadcast %29 : vector<1x128xf32> to vector<16x128xf32>
    %31 = arith.addf %28, %30 : vector<16x128xf32>
    %cst = arith.constant 0.000000e+00 : f32
    %32 = vector.broadcast %cst : f32 to vector<16x128xf32>
    %33 = arith.maximumf %31, %32 : vector<16x128xf32>
    %c1_i32_9 = arith.constant 1 : i32
    %34 = tpu.dynamic_rotate %33 by %c1_i32_9 dim 0 : vector<16x128xf32>, i32 -> vector<16x128xf32>
    %35 = vector.broadcast %21 : vector<16x1xf32> to vector<16x128xf32>
    %36 = arith.mulf %35, %34 : vector<16x128xf32>
    %37 = arith.truncf %36 : vector<16x128xf32> to vector<16x128xbf16>
    %c15_i32_10 = arith.constant 15 : i32
    %38 = tpu.dynamic_rotate %33 by %c15_i32_10 dim 0 : vector<16x128xf32>, i32 -> vector<16x128xf32>
    %39 = vector.broadcast %25 : vector<16x1xf32> to vector<16x128xf32>
    %40 = arith.mulf %39, %38 : vector<16x128xf32>
    %41 = arith.truncf %40 : vector<16x128xf32> to vector<16x128xbf16>
    %42 = arith.truncf %33 : vector<16x128xf32> to vector<16x128xbf16>
    %c0_11 = arith.constant 0 : index
    %c0_12 = arith.constant 0 : index
    %43 = vector.load %arg4[%c0_11, %c0_12] : memref<384x128xbf16, #tpu.memory_space<vmem>>, vector<128x128xbf16>
    %cst_13 = arith.constant dense<0.000000e+00> : vector<16x128xf32>
    %44 = tpu.matmul %37, %43, %cst_13 {dimension_numbers = #tpu.dot_dimension_numbers<[1], [0], [0], [1], [0, 0, 1, 1], [], []>} : vector<16x128xbf16>, vector<128x128xbf16>, vector<16x128xf32> -> vector<16x128xf32>
    %c128 = arith.constant 128 : index
    %c0_14 = arith.constant 0 : index
    %45 = vector.load %arg4[%c128, %c0_14] : memref<384x128xbf16, #tpu.memory_space<vmem>>, vector<128x128xbf16>
    %cst_15 = arith.constant dense<0.000000e+00> : vector<16x128xf32>
    %46 = tpu.matmul %42, %45, %cst_15 {dimension_numbers = #tpu.dot_dimension_numbers<[1], [0], [0], [1], [0, 0, 1, 1], [], []>} : vector<16x128xbf16>, vector<128x128xbf16>, vector<16x128xf32> -> vector<16x128xf32>
    %47 = arith.addf %44, %46 : vector<16x128xf32>
    %c256 = arith.constant 256 : index
    %c0_16 = arith.constant 0 : index
    %48 = vector.load %arg4[%c256, %c0_16] : memref<384x128xbf16, #tpu.memory_space<vmem>>, vector<128x128xbf16>
    %cst_17 = arith.constant dense<0.000000e+00> : vector<16x128xf32>
    %49 = tpu.matmul %41, %48, %cst_17 {dimension_numbers = #tpu.dot_dimension_numbers<[1], [0], [0], [1], [0, 0, 1, 1], [], []>} : vector<16x128xbf16>, vector<128x128xbf16>, vector<16x128xf32> -> vector<16x128xf32>
    %50 = arith.addf %47, %49 : vector<16x128xf32>
    %c0_18 = arith.constant 0 : index
    %c0_19 = arith.constant 0 : index
    %51 = vector.load %arg5[%c0_18, %c0_19] : memref<1x128xf32, #tpu.memory_space<vmem>>, vector<1x128xf32>
    %52 = vector.broadcast %51 : vector<1x128xf32> to vector<16x128xf32>
    %53 = arith.mulf %50, %52 : vector<16x128xf32>
    %c0_20 = arith.constant 0 : index
    %c0_21 = arith.constant 0 : index
    %54 = vector.load %arg6[%c0_20, %c0_21] : memref<1x128xf32, #tpu.memory_space<vmem>>, vector<1x128xf32>
    %55 = vector.broadcast %54 : vector<1x128xf32> to vector<16x128xf32>
    %56 = arith.addf %53, %55 : vector<16x128xf32>
    %cst_22 = arith.constant 0.000000e+00 : f32
    %57 = vector.broadcast %cst_22 : f32 to vector<16x128xf32>
    %58 = arith.maximumf %56, %57 : vector<16x128xf32>
    %c1_i32_23 = arith.constant 1 : i32
    %59 = tpu.dynamic_rotate %58 by %c1_i32_23 dim 0 : vector<16x128xf32>, i32 -> vector<16x128xf32>
    %60 = vector.broadcast %21 : vector<16x1xf32> to vector<16x128xf32>
    %61 = arith.mulf %60, %59 : vector<16x128xf32>
    %62 = arith.truncf %61 : vector<16x128xf32> to vector<16x128xbf16>
    %c15_i32_24 = arith.constant 15 : i32
    %63 = tpu.dynamic_rotate %58 by %c15_i32_24 dim 0 : vector<16x128xf32>, i32 -> vector<16x128xf32>
    %64 = vector.broadcast %25 : vector<16x1xf32> to vector<16x128xf32>
    %65 = arith.mulf %64, %63 : vector<16x128xf32>
    %66 = arith.truncf %65 : vector<16x128xf32> to vector<16x128xbf16>
    %67 = arith.truncf %58 : vector<16x128xf32> to vector<16x128xbf16>
    %c0_25 = arith.constant 0 : index
    %c0_26 = arith.constant 0 : index
    %68 = vector.load %arg7[%c0_25, %c0_26] : memref<384x128xbf16, #tpu.memory_space<vmem>>, vector<128x128xbf16>
    %cst_27 = arith.constant dense<0.000000e+00> : vector<16x128xf32>
    %69 = tpu.matmul %62, %68, %cst_27 {dimension_numbers = #tpu.dot_dimension_numbers<[1], [0], [0], [1], [0, 0, 1, 1], [], []>} : vector<16x128xbf16>, vector<128x128xbf16>, vector<16x128xf32> -> vector<16x128xf32>
    %c128_28 = arith.constant 128 : index
    %c0_29 = arith.constant 0 : index
    %70 = vector.load %arg7[%c128_28, %c0_29] : memref<384x128xbf16, #tpu.memory_space<vmem>>, vector<128x128xbf16>
    %cst_30 = arith.constant dense<0.000000e+00> : vector<16x128xf32>
    %71 = tpu.matmul %67, %70, %cst_30 {dimension_numbers = #tpu.dot_dimension_numbers<[1], [0], [0], [1], [0, 0, 1, 1], [], []>} : vector<16x128xbf16>, vector<128x128xbf16>, vector<16x128xf32> -> vector<16x128xf32>
    %72 = arith.addf %69, %71 : vector<16x128xf32>
    %c256_31 = arith.constant 256 : index
    %c0_32 = arith.constant 0 : index
    %73 = vector.load %arg7[%c256_31, %c0_32] : memref<384x128xbf16, #tpu.memory_space<vmem>>, vector<128x128xbf16>
    %cst_33 = arith.constant dense<0.000000e+00> : vector<16x128xf32>
    %74 = tpu.matmul %66, %73, %cst_33 {dimension_numbers = #tpu.dot_dimension_numbers<[1], [0], [0], [1], [0, 0, 1, 1], [], []>} : vector<16x128xbf16>, vector<128x128xbf16>, vector<16x128xf32> -> vector<16x128xf32>
    %75 = arith.addf %72, %74 : vector<16x128xf32>
    %76 = arith.addf %0, %75 : vector<16x128xf32>
    %c0_34 = arith.constant 0 : index
    %c0_35 = arith.constant 0 : index
    %77 = vector.load %arg8[%c0_34, %c0_35] : memref<1x128xf32, #tpu.memory_space<vmem>>, vector<1x128xf32>
    %78 = vector.broadcast %77 : vector<1x128xf32> to vector<16x128xf32>
    %79 = arith.addf %76, %78 : vector<16x128xf32>
    %c0_36 = arith.constant 0 : index
    %c0_37 = arith.constant 0 : index
    %80 = vector.load %arg9[%c0_36, %c0_37] : memref<16x128xf32, #tpu.memory_space<vmem>>, vector<16x128xf32>
    tpu.vector_store %arg9[%c0_36, %c0_37], %79 {strides = array<i32>} : memref<16x128xf32, #tpu.memory_space<vmem>>, vector<16x128xf32>,
    return
  }
  func.func @transform_0(%arg0: i32) -> (i32, i32) {
    %c0_i32 = arith.constant 0 : i32
    %c0_i32_0 = arith.constant 0 : i32
    return %arg0, %c0_i32 : i32, i32
  }
  func.func @transform_1(%arg0: i32) -> (i32, i32) {
    %c0_i32 = arith.constant 0 : i32
    %c0_i32_0 = arith.constant 0 : i32
    %c0_i32_1 = arith.constant 0 : i32
    return %c0_i32, %c0_i32_0 : i32, i32
  }
  func.func @transform_2(%arg0: i32) -> (i32, i32) {
    %c0_i32 = arith.constant 0 : i32
    %c0_i32_0 = arith.constant 0 : i32
    %c0_i32_1 = arith.constant 0 : i32
    return %c0_i32, %c0_i32_0 : i32, i32
  }
  func.func @transform_3(%arg0: i32) -> (i32, i32) {
    %c0_i32 = arith.constant 0 : i32
    %c0_i32_0 = arith.constant 0 : i32
    %c0_i32_1 = arith.constant 0 : i32
    return %c0_i32, %c0_i32_0 : i32, i32
  }
  func.func @transform_4(%arg0: i32) -> (i32, i32) {
    %c0_i32 = arith.constant 0 : i32
    %c0_i32_0 = arith.constant 0 : i32
    %c0_i32_1 = arith.constant 0 : i32
    return %c0_i32, %c0_i32_0 : i32, i32
  }
  func.func @transform_5(%arg0: i32) -> (i32, i32) {
    %c0_i32 = arith.constant 0 : i32
    %c0_i32_0 = arith.constant 0 : i32
    %c0_i32_1 = arith.constant 0 : i32
    return %c0_i32, %c0_i32_0 : i32, i32
  }
  func.func @transform_6(%arg0: i32) -> (i32, i32) {
    %c0_i32 = arith.constant 0 : i32
    %c0_i32_0 = arith.constant 0 : i32
    %c0_i32_1 = arith.constant 0 : i32
    return %c0_i32, %c0_i32_0 : i32, i32
  }
  func.func @transform_7(%arg0: i32) -> (i32, i32) {
    %c0_i32 = arith.constant 0 : i32
    %c0_i32_0 = arith.constant 0 : i32
    %c0_i32_1 = arith.constant 0 : i32
    return %c0_i32, %c0_i32_0 : i32, i32
  }
  func.func @transform_8(%arg0: i32) -> (i32, i32) {
    %c0_i32 = arith.constant 0 : i32
    %c0_i32_0 = arith.constant 0 : i32
    return %arg0, %c0_i32 : i32, i32
  }
}

module attributes {stable_mosaic.version = 11 : i64} {
  func.func @resblock_kernel(%arg0: i32, %arg1: memref<16x128xf32, #tpu.memory_space<vmem>>, %arg2: memref<1x128xf32, #tpu.memory_space<vmem>>, %arg3: memref<1x128xf32, #tpu.memory_space<vmem>>, %arg4: memref<384x128xbf16, #tpu.memory_space<vmem>>, %arg5: memref<1x128xf32, #tpu.memory_space<vmem>>, %arg6: memref<1x128xf32, #tpu.memory_space<vmem>>, %arg7: memref<384x128xbf16, #tpu.memory_space<vmem>>, %arg8: memref<1x128xf32, #tpu.memory_space<vmem>>, %arg9: memref<16x128xf32, #tpu.memory_space<vmem>>) attributes {dimension_semantics = [#tpu.dimension_semantics<parallel>], iteration_bounds = array<i64: 2>, scalar_prefetch = 0 : i64, scratch_operands = 0 : i64, tpu.core_type = #tpu.core_type<tc>, window_params = [{transform_indices = @transform_0, window_bounds = array<i64: 16, 128>}, {pipeline_mode = #tpu.pipeline_mode<synchronous>, transform_indices = @transform_1, window_bounds = array<i64: 1, 128>}, {pipeline_mode = #tpu.pipeline_mode<synchronous>, transform_indices = @transform_2, window_bounds = array<i64: 1, 128>}, {pipeline_mode = #tpu.pipeline_mode<synchronous>, transform_indices = @transform_3, window_bounds = array<i64: 384, 128>}, {pipeline_mode = #tpu.pipeline_mode<synchronous>, transform_indices = @transform_4, window_bounds = array<i64: 1, 128>}, {pipeline_mode = #tpu.pipeline_mode<synchronous>, transform_indices = @transform_5, window_bounds = array<i64: 1, 128>}, {pipeline_mode = #tpu.pipeline_mode<synchronous>, transform_indices = @transform_6, window_bounds = array<i64: 384, 128>}, {pipeline_mode = #tpu.pipeline_mode<synchronous>, transform_indices = @transform_7, window_bounds = array<i64: 1, 128>}, {transform_indices = @transform_8, window_bounds = array<i64: 16, 128>}]} {
    %c0 = arith.constant 0 : index
    %c0_0 = arith.constant 0 : index
    %0 = vector.load %arg1[%c0, %c0_0] : memref<16x128xf32, #tpu.memory_space<vmem>>, vector<16x128xf32>
    %1 = tpu.iota {dimensions = array<i32: 0>} : vector<16x1xi32>
    %c16_i32 = arith.constant 16 : i32
    %c0_i32 = arith.constant 0 : i32
    %2 = arith.cmpi eq, %c16_i32, %c0_i32 : i32
    %c1_i32 = arith.constant 1 : i32
    %3 = arith.select %2, %c1_i32, %c16_i32 : i32
    %4 = vector.broadcast %3 : i32 to vector<16x1xi32>
    %5 = arith.remsi %1, %4 : vector<16x1xi32>
    %c0_i32_1 = arith.constant 0 : i32
    %6 = vector.broadcast %c0_i32_1 : i32 to vector<16x1xi32>
    %7 = arith.cmpi ne, %5, %6 : vector<16x1xi32>
    %c0_i32_2 = arith.constant 0 : i32
    %8 = vector.broadcast %c0_i32_2 : i32 to vector<16x1xi32>
    %9 = arith.cmpi slt, %5, %8 : vector<16x1xi32>
    %c0_i32_3 = arith.constant 0 : i32
    %10 = arith.cmpi slt, %3, %c0_i32_3 : i32
    %11 = vector.broadcast %10 : i1 to vector<16x1xi1>
    %12 = vector.broadcast %11 : vector<16x1xi1> to vector<16x1xi1>
    %13 = arith.xori %9, %12 : vector<16x1xi1>
    %14 = arith.andi %13, %7 : vector<16x1xi1>
    %15 = vector.broadcast %3 : i32 to vector<16x1xi32>
    %16 = arith.addi %5, %15 : vector<16x1xi32>
    %17 = arith.select %14, %16, %5 : vector<16x1xi1>, vector<16x1xi32>
    %c0_i32_4 = arith.constant 0 : i32
    %18 = vector.broadcast %c0_i32_4 : i32 to vector<16x1xi32>
    %19 = arith.cmpi ne, %17, %18 : vector<16x1xi32>
    %20 = arith.extui %19 : vector<16x1xi1> to vector<16x1xi32>
    %21 = arith.sitofp %20 : vector<16x1xi32> to vector<16x1xf32>
    %c15_i32 = arith.constant 15 : i32
    %22 = vector.broadcast %c15_i32 : i32 to vector<16x1xi32>
    %23 = arith.cmpi ne, %17, %22 : vector<16x1xi32>
    %24 = arith.extui %23 : vector<16x1xi1> to vector<16x1xi32>
    %25 = arith.sitofp %24 : vector<16x1xi32> to vector<16x1xf32>
    %c0_5 = arith.constant 0 : index
    %c0_6 = arith.constant 0 : index
    %26 = vector.load %arg2[%c0_5, %c0_6] : memref<1x128xf32, #tpu.memory_space<vmem>>, vector<1x128xf32>
    %27 = vector.broadcast %26 : vector<1x128xf32> to vector<16x128xf32>
    %28 = arith.mulf %0, %27 : vector<16x128xf32>
    %c0_7 = arith.constant 0 : index
    %c0_8 = arith.constant 0 : index
    %29 = vector.load %arg3[%c0_7, %c0_8] : memref<1x128xf32, #tpu.memory_space<vmem>>, vector<1x128xf32>
    %30 = vector.broadcast %29 : vector<1x128xf32> to vector<16x128xf32>
    %31 = arith.addf %28, %30 : vector<16x128xf32>
    %cst = arith.constant 0.000000e+00 : f32
    %32 = vector.broadcast %cst : f32 to vector<16x128xf32>
    %33 = arith.maximumf %31, %32 : vector<16x128xf32>
    %c1_i32_9 = arith.constant 1 : i32
    %34 = tpu.dynamic_rotate %33 by %c1_i32_9 dim 0 : vector<16x128xf32>, i32 -> vector<16x128xf32>
    %35 = vector.broadcast %21 : vector<16x1xf32> to vector<16x128xf32>
    %36 = arith.mulf %35, %34 : vector<16x128xf32>
    %37 = arith.truncf %36 : vector<16x128xf32> to vector<16x128xbf16>
    %c15_i32_10 = arith.constant 15 : i32
    %38 = tpu.dynamic_rotate %33 by %c15_i32_10 dim 0 : vector<16x128xf32>, i32 -> vector<16x128xf32>
    %39 = vector.broadcast %25 : vector<16x1xf32> to vector<16x128xf32>
    %40 = arith.mulf %39, %38 : vector<16x128xf32>
    %41 = arith.truncf %40 : vector<16x128xf32> to vector<16x128xbf16>
    %42 = arith.truncf %33 : vector<16x128xf32> to vector<16x128xbf16>
    %c0_11 = arith.constant 0 : index
    %c0_12 = arith.constant 0 : index
    %43 = vector.load %arg4[%c0_11, %c0_12] : memref<384x128xbf16, #tpu.memory_space<vmem>>, vector<128x128xbf16>
    %cst_13 = arith.constant dense<0.000000e+00> : vector<16x128xf32>
    %44 = tpu.matmul %37, %43, %cst_13 {dimension_numbers = #tpu.dot_dimension_numbers<[1], [0], [0], [1], [0, 0, 1, 1], [], []>} : vector<16x128xbf16>, vector<128x128xbf16>, vector<16x128xf32> -> vector<16x128xf32>
    %c128 = arith.constant 128 : index
    %c0_14 = arith.constant 0 : index
    %45 = vector.load %arg4[%c128, %c0_14] : memref<384x128xbf16, #tpu.memory_space<vmem>>, vector<128x128xbf16>
    %cst_15 = arith.constant dense<0.000000e+00> : vector<16x128xf32>
    %46 = tpu.matmul %42, %45, %cst_15 {dimension_numbers = #tpu.dot_dimension_numbers<[1], [0], [0], [1], [0, 0, 1, 1], [], []>} : vector<16x128xbf16>, vector<128x128xbf16>, vector<16x128xf32> -> vector<16x128xf32>
    %47 = arith.addf %44, %46 : vector<16x128xf32>
    %c256 = arith.constant 256 : index
    %c0_16 = arith.constant 0 : index
    %48 = vector.load %arg4[%c256, %c0_16] : memref<384x128xbf16, #tpu.memory_space<vmem>>, vector<128x128xbf16>
    %cst_17 = arith.constant dense<0.000000e+00> : vector<16x128xf32>
    %49 = tpu.matmul %41, %48, %cst_17 {dimension_numbers = #tpu.dot_dimension_numbers<[1], [0], [0], [1], [0, 0, 1, 1], [], []>} : vector<16x128xbf16>, vector<128x128xbf16>, vector<16x128xf32> -> vector<16x128xf32>
    %50 = arith.addf %47, %49 : vector<16x128xf32>
    %c0_18 = arith.constant 0 : index
    %c0_19 = arith.constant 0 : index
    %51 = vector.load %arg5[%c0_18, %c0_19] : memref<1x128xf32, #tpu.memory_space<vmem>>, vector<1x128xf32>
    %52 = vector.broadcast %51 : vector<1x128xf32> to vector<16x128xf32>
    %53 = arith.mulf %50, %52 : vector<16x128xf32>
    %c0_20 = arith.constant 0 : index
    %c0_21 = arith.constant 0 : index
    %54 = vector.load %arg6[%c0_20, %c0_21] : memref<1x128xf32, #tpu.memory_space<vmem>>, vector<1x128xf32>
    %55 = vector.broadcast %54 : vector<1x128xf32> to vector<16x128xf32>
    %56 = arith.addf %53, %55 : vector<16x128xf32>
    %cst_22 = arith.constant 0.000000e+00 : f32
    %57 = vector.broadcast %cst_22 : f32 to vector<16x128xf32>
    %58 = arith.maximumf %56, %57 : vector<16x128xf32>
    %c1_i32_23 = arith.constant 1 : i32
    %59 = tpu.dynamic_rotate %58 by %c1_i32_23 dim 0 : vector<16x128xf32>, i32 -> vector<16x128xf32>
    %60 = vector.broadcast %21 : vector<16x1xf32> to vector<16x128xf32>
    %61 = arith.mulf %60, %59 : vector<16x128xf32>
    %62 = arith.truncf %61 : vector<16x128xf32> to vector<16x128xbf16>
    %c15_i32_24 = arith.constant 15 : i32
    %63 = tpu.dynamic_rotate %58 by %c15_i32_24 dim 0 : vector<16x128xf32>, i32 -> vector<16x128xf32>
    %64 = vector.broadcast %25 : vector<16x1xf32> to vector<16x128xf32>
    %65 = arith.mulf %64, %63 : vector<16x128xf32>
    %66 = arith.truncf %65 : vector<16x128xf32> to vector<16x128xbf16>
    %67 = arith.truncf %58 : vector<16x128xf32> to vector<16x128xbf16>
    %c0_25 = arith.constant 0 : index
    %c0_26 = arith.constant 0 : index
    %68 = vector.load %arg7[%c0_25, %c0_26] : memref<384x128xbf16, #tpu.memory_space<vmem>>, vector<128x128xbf16>
    %cst_27 = arith.constant dense<0.000000e+00> : vector<16x128xf32>
    %69 = tpu.matmul %62, %68, %cst_27 {dimension_numbers = #tpu.dot_dimension_numbers<[1], [0], [0], [1], [0, 0, 1, 1], [], []>} : vector<16x128xbf16>, vector<128x128xbf16>, vector<16x128xf32> -> vector<16x128xf32>
    %c128_28 = arith.constant 128 : index
    %c0_29 = arith.constant 0 : index
    %70 = vector.load %arg7[%c128_28, %c0_29] : memref<384x128xbf16, #tpu.memory_space<vmem>>, vector<128x128xbf16>
    %cst_30 = arith.constant dense<0.000000e+00> : vector<16x128xf32>
    %71 = tpu.matmul %67, %70, %cst_30 {dimension_numbers = #tpu.dot_dimension_numbers<[1], [0], [0], [1], [0, 0, 1, 1], [], []>} : vector<16x128xbf16>, vector<128x128xbf16>, vector<16x128xf32> -> vector<16x128xf32>
    %72 = arith.addf %69, %71 : vector<16x128xf32>
    %c256_31 = arith.constant 256 : index
    %c0_32 = arith.constant 0 : index
    %73 = vector.load %arg7[%c256_31, %c0_32] : memref<384x128xbf16, #tpu.memory_space<vmem>>, vector<128x128xbf16>
    %cst_33 = arith.constant dense<0.000000e+00> : vector<16x128xf32>
    %74 = tpu.matmul %66, %73, %cst_33 {dimension_numbers = #tpu.dot_dimension_numbers<[1], [0], [0], [1], [0, 0, 1, 1], [], []>} : vector<16x128xbf16>, vector<128x128xbf16>, vector<16x128xf32> -> vector<16x128xf32>
    %75 = arith.addf %72, %74 : vector<16x128xf32>
    %76 = arith.addf %0, %75 : vector<16x128xf32>
    %c0_34 = arith.constant 0 : index
    %c0_35 = arith.constant 0 : index
    %77 = vector.load %arg8[%c0_34, %c0_35] : memref<1x128xf32, #tpu.memory_space<vmem>>, vector<1x128xf32>
    %78 = vector.broadcast %77 : vector<1x128xf32> to vector<16x128xf32>
    %79 = arith.addf %76, %78 : vector<16x128xf32>
    %c0_36 = arith.constant 0 : index
    %c0_37 = arith.constant 0 : index
    %80 = vector.load %arg9[%c0_36, %c0_37] : memref<16x128xf32, #tpu.memory_space<vmem>>, vector<16x128xf32>
    tpu.vector_store %arg9[%c0_36, %c0_37], %79 {strides = array<i32>} : memref<16x128xf32, #tpu.memory_space<vmem>>, vector<16x128xf32>,
    return
  }
  func.func @transform_0(%arg0: i32) -> (i32, i32) {
    %c0_i32 = arith.constant 0 : i32
    %c0_i32_0 = arith.constant 0 : i32
    return %arg0, %c0_i32 : i32, i32
  }
  func.func @transform_1(%arg0: i32) -> (i32, i32) {
    %c0_i32 = arith.constant 0 : i32
    %c0_i32_0 = arith.constant 0 : i32
    %c0_i32_1 = arith.constant 0 : i32
    return %c0_i32, %c0_i32_0 : i32, i32
  }
  func.func @transform_2(%arg0: i32) -> (i32, i32) {
    %c0_i32 = arith.constant 0 : i32
    %c0_i32_0 = arith.constant 0 : i32
    %c0_i32_1 = arith.constant 0 : i32
    return %c0_i32, %c0_i32_0 : i32, i32
  }
  func.func @transform_3(%arg0: i32) -> (i32, i32) {
    %c0_i32 = arith.constant 0 : i32
    %c0_i32_0 = arith.constant 0 : i32
    %c0_i32_1 = arith.constant 0 : i32
    return %c0_i32, %c0_i32_0 : i32, i32
  }
  func.func @transform_4(%arg0: i32) -> (i32, i32) {
    %c0_i32 = arith.constant 0 : i32
    %c0_i32_0 = arith.constant 0 : i32
    %c0_i32_1 = arith.constant 0 : i32
    return %c0_i32, %c0_i32_0 : i32, i32
  }
  func.func @transform_5(%arg0: i32) -> (i32, i32) {
    %c0_i32 = arith.constant 0 : i32
    %c0_i32_0 = arith.constant 0 : i32
    %c0_i32_1 = arith.constant 0 : i32
    return %c0_i32, %c0_i32_0 : i32, i32
  }
  func.func @transform_6(%arg0: i32) -> (i32, i32) {
    %c0_i32 = arith.constant 0 : i32
    %c0_i32_0 = arith.constant 0 : i32
    %c0_i32_1 = arith.constant 0 : i32
    return %c0_i32, %c0_i32_0 : i32, i32
  }
  func.func @transform_7(%arg0: i32) -> (i32, i32) {
    %c0_i32 = arith.constant 0 : i32
    %c0_i32_0 = arith.constant 0 : i32
    %c0_i32_1 = arith.constant 0 : i32
    return %c0_i32, %c0_i32_0 : i32, i32
  }
  func.func @transform_8(%arg0: i32) -> (i32, i32) {
    %c0_i32 = arith.constant 0 : i32
    %c0_i32_0 = arith.constant 0 : i32
    return %arg0, %c0_i32 : i32, i32
  }
}

</mosaic_0001>

<llo_original>
// kernel: tpu_custom_call.1
$region0: #{tpu_custom_call.1}
  #allocation0 [shape = 'u32[]', space=smem, size = 0x4, offset = 0x4, fixed_abs, tag = 'smem constant byte address 0x4 - core index']
  #allocation1 [shape = 'u32[144,128]{1,0:T(1,128)}', space=vmem, size = 0x12000, scoped, tag = 'internal scratch']
  %s0 = inlined_call_operand.hbm [shape: f32[32,128], index: 0, kind: input, shape index: {}]
  %s1 = inlined_call_operand.vmem [shape: f32[1,128], index: 1, kind: input, shape index: {}]
  %s2 = inlined_call_operand.vmem [shape: f32[1,128], index: 2, kind: input, shape index: {}]
  %s3 = inlined_call_operand.hbm [shape: bf16[384,128], index: 3, kind: input, shape index: {}]
  %s4 = inlined_call_operand.vmem [shape: f32[1,128], index: 4, kind: input, shape index: {}]
  %s5 = inlined_call_operand.vmem [shape: f32[1,128], index: 5, kind: input, shape index: {}]
  %s6 = inlined_call_operand.hbm [shape: bf16[384,128], index: 6, kind: input, shape index: {}]
  %s7 = inlined_call_operand.vmem [shape: f32[1,128], index: 7, kind: input, shape index: {}]
  %s8 = inlined_call_operand.hbm [shape: f32[32,128], index: 8, kind: output, shape index: {}]
  %s9 = sld [smem:[#allocation0]]
  $region77: #{tpu_custom_call.1} parent=0
    _
  %s11 = ssub.s32 1, %s9
  %s12 = scalar_select 0, %s11, %s9
  $region1: #{tpu_custom_call.1} parent=0
    #allocation2 [shape = 'u8[16384]{0}', space=vmem, size = 0x4000, scoped, tag = 'input window, operand 0']
    #allocation3 [shape = 's32[2]{0}', space=sflag, size = 0x8, scoped, tag = 'scoped memory for tpu_custom_call.1']
    #allocation4 [shape = 's32[2]{0}', space=sflag, size = 0x8, scoped, tag = 'scoped memory for tpu_custom_call.1']
    #allocation5 [shape = 'u8[98304]{0}', space=vmem, size = 0x18000, scoped, tag = 'input window, operand 3, single buffered']
    #allocation6 [shape = 's32[1]{0}', space=sflag, size = 0x4, scoped, tag = 'scoped memory for tpu_custom_call.1']
    #allocation7 [shape = 'u8[98304]{0}', space=vmem, size = 0x18000, scoped, tag = 'input window, operand 6, single buffered']
    #allocation8 [shape = 'u8[16384]{0}', space=vmem, size = 0x4000, scoped, tag = 'output window, operand 0']
    %13 = vsyncpa [#allocation3], 0
    %s14 = scalar_lea.sflag [#allocation3], 1
    %15 = vsyncpa %s14, 0
    %16 = vsyncpa [#allocation6], 0
    %17 = vsyncpa [#allocation4], 0
    %s18 = scalar_lea.sflag [#allocation4], 1
    %19 = vsyncpa %s18, 0
    loop: start=0, step=1, limit=4
    $region2: #{tpu_custom_call.1} parent=1 // loop_pre_header
      _
    $region3: #{tpu_custom_call.1} parent=1 // loop_header
      %s21 = sphi 0, %s25
      %p22 = scmp.ge.s32.totalorder %s21, 4
      %s31 = sphi 0, %s33
      %s34 = sphi 0, %s31
      %s35 = sphi 0, %s34
      %s51 = sphi 0, %s35
      %s55 = sphi 0, %s55
      %s57 = sphi 0, %s55
      %s58 = sphi 0, %s57
      %s72 = sphi 0, %s58
      %s76 = sphi 0, %s76
      %s78 = sphi 0, %s76
      %s79 = sphi 0, %s78
      %s93 = sphi 0, %s79
      %s97 = sphi 0, %s97
      %s99 = sphi 0, %s97
      %s100 = sphi 0, %s99
      %s114 = sphi 0, %s100
      %s118 = sphi 0, %s118
      %s120 = sphi 0, %s118
      %s121 = sphi 0, %s120
      %s135 = sphi 0, %s121
      %s139 = sphi 0, %s139
      %s141 = sphi 0, %s139
      %s142 = sphi 0, %s141
      %s156 = sphi 0, %s142
      %s160 = sphi 0, %s160
      %s162 = sphi 0, %s160
      %s163 = sphi 0, %s162
      %s177 = sphi 0, %s163
      %s181 = sphi 0, %s181
      %s183 = sphi 0, %s181
      %s184 = sphi 0, %s183
      %s198 = sphi 0, %s184
      %s204 = sphi 0, %s206
      %s207 = sphi 0, %s204
      %s208 = sphi 0, %s207
      %s224 = sphi 0, %s208
    $region4: #{tpu_custom_call.1} parent=1 // loop_header_branch
      %24 = sbr.rel (%p22) target = $region8
    $region5: #{tpu_custom_call.1} parent=1 // loop_body
      %s26 = ssub.s32 %s21, 1
      %s27 = ssub.s32 %s21, 2
      %s28 = sadd.s32 %s21, 1
      %s29 = ssub.s32 %s21, %s28
      %p30 = scmp.eq.s32.totalorder %s29, 0
      %s32 = sadd.s32 %s31, 1
      %s33 = scalar_select %p30, %s31, %s32
      %p36 = pneg %p30
      %p37 = scmp.eq.s32.totalorder %s21, 1
      %p38 = por %p36, %p37
      %p39 = scmp.ne.s32.totalorder %s31, %s34
      %p40 = scmp.eq.s32.totalorder %s21, 0
      %p41 = por %p39, %p40
      %p42 = scmp.ne.s32.totalorder %s31, %s34
      %p43 = scmp.eq.s32.totalorder %s26, 1
      %p44 = por %p42, %p43
      %p45 = scmp.ne.s32.totalorder %s34, %s35
      %p46 = scmp.eq.s32.totalorder %s26, 0
      %p47 = por %p45, %p46
      %p48 = scmp.ne.s32.totalorder %s34, %s35
      %p49 = scmp.eq.s32.totalorder %s27, 1
      %p50 = por %p48, %p49
      %p52 = scmp.ne.s32.totalorder %s35, %s51
      %p53 = scmp.eq.s32.totalorder %s27, 0
      %p54 = por %p52, %p53
      %s56 = sadd.s32 %s55, 1
      %p59 = scmp.eq.s32.totalorder %s21, 1
      %p60 = scmp.ne.s32.totalorder %s55, %s57
      %p61 = scmp.eq.s32.totalorder %s21, 0
      %p62 = por %p60, %p61
      %p63 = scmp.ne.s32.totalorder %s55, %s57
      %p64 = scmp.eq.s32.totalorder %s26, 1
      %p65 = por %p63, %p64
      %p66 = scmp.ne.s32.totalorder %s57, %s58
      %p67 = scmp.eq.s32.totalorder %s26, 0
      %p68 = por %p66, %p67
      %p69 = scmp.ne.s32.totalorder %s57, %s58
      %p70 = scmp.eq.s32.totalorder %s27, 1
      %p71 = por %p69, %p70
      %p73 = scmp.ne.s32.totalorder %s58, %s72
      %p74 = scmp.eq.s32.totalorder %s27, 0
      %p75 = por %p73, %p74
      %s77 = sadd.s32 %s76, 1
      %p80 = scmp.eq.s32.totalorder %s21, 1
      %p81 = scmp.ne.s32.totalorder %s76, %s78
      %p82 = scmp.eq.s32.totalorder %s21, 0
      %p83 = por %p81, %p82
      %p84 = scmp.ne.s32.totalorder %s76, %s78
      %p85 = scmp.eq.s32.totalorder %s26, 1
      %p86 = por %p84, %p85
      %p87 = scmp.ne.s32.totalorder %s78, %s79
      %p88 = scmp.eq.s32.totalorder %s26, 0
      %p89 = por %p87, %p88
      %p90 = scmp.ne.s32.totalorder %s78, %s79
      %p91 = scmp.eq.s32.totalorder %s27, 1
      %p92 = por %p90, %p91
      %p94 = scmp.ne.s32.totalorder %s79, %s93
      %p95 = scmp.eq.s32.totalorder %s27, 0
      %p96 = por %p94, %p95
      %s98 = sadd.s32 %s97, 1
      %p101 = scmp.eq.s32.totalorder %s21, 1
      %p102 = scmp.ne.s32.totalorder %s97, %s99
      %p103 = scmp.eq.s32.totalorder %s21, 0
      %p104 = por %p102, %p103
      %p105 = scmp.ne.s32.totalorder %s97, %s99
      %p106 = scmp.eq.s32.totalorder %s26, 1
      %p107 = por %p105, %p106
      %p108 = scmp.ne.s32.totalorder %s99, %s100
      %p109 = scmp.eq.s32.totalorder %s26, 0
      %p110 = por %p108, %p109
      %p111 = scmp.ne.s32.totalorder %s99, %s100
      %p112 = scmp.eq.s32.totalorder %s27, 1
      %p113 = por %p111, %p112
      %p115 = scmp.ne.s32.totalorder %s100, %s114
      %p116 = scmp.eq.s32.totalorder %s27, 0
      %p117 = por %p115, %p116
      %s119 = sadd.s32 %s118, 1
      %p122 = scmp.eq.s32.totalorder %s21, 1
      %p123 = scmp.ne.s32.totalorder %s118, %s120
      %p124 = scmp.eq.s32.totalorder %s21, 0
      %p125 = por %p123, %p124
      %p126 = scmp.ne.s32.totalorder %s118, %s120
      %p127 = scmp.eq.s32.totalorder %s26, 1
      %p128 = por %p126, %p127
      %p129 = scmp.ne.s32.totalorder %s120, %s121
      %p130 = scmp.eq.s32.totalorder %s26, 0
      %p131 = por %p129, %p130
      %p132 = scmp.ne.s32.totalorder %s120, %s121
      %p133 = scmp.eq.s32.totalorder %s27, 1
      %p134 = por %p132, %p133
      %p136 = scmp.ne.s32.totalorder %s121, %s135
      %p137 = scmp.eq.s32.totalorder %s27, 0
      %p138 = por %p136, %p137
      %s140 = sadd.s32 %s139, 1
      %p143 = scmp.eq.s32.totalorder %s21, 1
      %p144 = scmp.ne.s32.totalorder %s139, %s141
      %p145 = scmp.eq.s32.totalorder %s21, 0
      %p146 = por %p144, %p145
      %p147 = scmp.ne.s32.totalorder %s139, %s141
      %p148 = scmp.eq.s32.totalorder %s26, 1
      %p149 = por %p147, %p148
      %p150 = scmp.ne.s32.totalorder %s141, %s142
      %p151 = scmp.eq.s32.totalorder %s26, 0
      %p152 = por %p150, %p151
      %p153 = scmp.ne.s32.totalorder %s141, %s142
      %p154 = scmp.eq.s32.totalorder %s27, 1
      %p155 = por %p153, %p154
      %p157 = scmp.ne.s32.totalorder %s142, %s156
      %p158 = scmp.eq.s32.totalorder %s27, 0
      %p159 = por %p157, %p158
      %s161 = sadd.s32 %s160, 1
      %p164 = scmp.eq.s32.totalorder %s21, 1
      %p165 = scmp.ne.s32.totalorder %s160, %s162
      %p166 = scmp.eq.s32.totalorder %s21, 0
      %p167 = por %p165, %p166
      %p168 = scmp.ne.s32.totalorder %s160, %s162
      %p169 = scmp.eq.s32.totalorder %s26, 1
      %p170 = por %p168, %p169
      %p171 = scmp.ne.s32.totalorder %s162, %s163
      %p172 = scmp.eq.s32.totalorder %s26, 0
      %p173 = por %p171, %p172
      %p174 = scmp.ne.s32.totalorder %s162, %s163
      %p175 = scmp.eq.s32.totalorder %s27, 1
      %p176 = por %p174, %p175
      %p178 = scmp.ne.s32.totalorder %s163, %s177
      %p179 = scmp.eq.s32.totalorder %s27, 0
      %p180 = por %p178, %p179
      %s182 = sadd.s32 %s181, 1
      %p185 = scmp.eq.s32.totalorder %s21, 1
      %p186 = scmp.ne.s32.totalorder %s181, %s183
      %p187 = scmp.eq.s32.totalorder %s21, 0
      %p188 = por %p186, %p187
      %p189 = scmp.ne.s32.totalorder %s181, %s183
      %p190 = scmp.eq.s32.totalorder %s26, 1
      %p191 = por %p189, %p190
      %p192 = scmp.ne.s32.totalorder %s183, %s184
      %p193 = scmp.eq.s32.totalorder %s26, 0
      %p194 = por %p192, %p193
      %p195 = scmp.ne.s32.totalorder %s183, %s184
      %p196 = scmp.eq.s32.totalorder %s27, 1
      %p197 = por %p195, %p196
      %p199 = scmp.ne.s32.totalorder %s184, %s198
      %p200 = scmp.eq.s32.totalorder %s27, 0
      %p201 = por %p199, %p200
      %s202 = ssub.s32 %s21, %s28
      %p203 = scmp.eq.s32.totalorder %s202, 0
      %s205 = sadd.s32 %s204, 1
      %s206 = scalar_select %p203, %s204, %s205
      %p209 = pneg %p203
      %p210 = scmp.eq.s32.totalorder %s21, 1
      %p211 = por %p209, %p210
      %p212 = scmp.ne.s32.totalorder %s204, %s207
      %p213 = scmp.eq.s32.totalorder %s21, 0
      %p214 = por %p212, %p213
      %p215 = scmp.ne.s32.totalorder %s204, %s207
      %p216 = scmp.eq.s32.totalorder %s26, 1
      %p217 = por %p215, %p216
      %p218 = scmp.ne.s32.totalorder %s207, %s208
      %p219 = scmp.eq.s32.totalorder %s26, 0
      %p220 = por %p218, %p219
      %p221 = scmp.ne.s32.totalorder %s207, %s208
      %p222 = scmp.eq.s32.totalorder %s27, 1
      %p223 = por %p221, %p222
      %p225 = scmp.ne.s32.totalorder %s208, %s224
      %p226 = scmp.eq.s32.totalorder %s27, 0
      %p227 = por %p225, %p226
      %p228 = scmp.le.s32.totalorder 1, %s21
      %p229 = scmp.lt.s32.totalorder %s21, 3
      %p230 = pnand %p228, %p229
      %p231 = pneg %p230
      // Predicated region
      $region9: #{tpu_custom_call.1} parent=5 // pred_check
        _
      $region10: #{tpu_custom_call.1} parent=5 // pred_check_branch
        %233 = sbr.rel (%p230) target = $region12
      $region11: #{tpu_custom_call.1} parent=5 // pred_region
        %s234 = ssub.s32 %s21, 1
        // Predicated region
        $region13: #{tpu_custom_call.1} parent=11 // pred_check
          %p235 = pneg %p68
        $region14: #{tpu_custom_call.1} parent=11 // pred_check_branch
          %237 = sbr.rel (%p235) target = $region16
        $region15: #{tpu_custom_call.1} parent=11 // pred_region
          _
        $region16: #{tpu_custom_call.1} parent=11 // pred_fallthru
          _
        // Predicated region
        $region17: #{tpu_custom_call.1} parent=11 // pred_check
          %p238 = pneg %p89
        $region18: #{tpu_custom_call.1} parent=11 // pred_check_branch
          %240 = sbr.rel (%p238) target = $region20
        $region19: #{tpu_custom_call.1} parent=11 // pred_region
          _
        $region20: #{tpu_custom_call.1} parent=11 // pred_fallthru
          _
        // Predicated region
        $region21: #{tpu_custom_call.1} parent=11 // pred_check
          %p241 = pneg %p110
        $region22: #{tpu_custom_call.1} parent=11 // pred_check_branch
          %243 = sbr.rel (%p241) target = $region24
        $region23: #{tpu_custom_call.1} parent=11 // pred_region
          %s245 = ssub.s32 3072, 3072
          %246 = vsyncadd [#allocation6], %s245
          %s247 = sshll.u32 [#allocation5], 4
          %s248 = int_to_ptr.vmem [resolvable:$true] %s247
          %253 = dma.hbm_to_vmem [thread:$0]  %s3, 3072, %s248, [#allocation6], 64, 64, 4
        $region24: #{tpu_custom_call.1} parent=11 // pred_fallthru
          _
        // Predicated region
        $region25: #{tpu_custom_call.1} parent=11 // pred_check
          %p254 = pneg %p131
        $region26: #{tpu_custom_call.1} parent=11 // pred_check_branch
          %256 = sbr.rel (%p254) target = $region28
        $region27: #{tpu_custom_call.1} parent=11 // pred_region
          _
        $region28: #{tpu_custom_call.1} parent=11 // pred_fallthru
          _
        // Predicated region
        $region29: #{tpu_custom_call.1} parent=11 // pred_check
          %p257 = pneg %p152
        $region30: #{tpu_custom_call.1} parent=11 // pred_check_branch
          %259 = sbr.rel (%p257) target = $region32
        $region31: #{tpu_custom_call.1} parent=11 // pred_region
          _
        $region32: #{tpu_custom_call.1} parent=11 // pred_fallthru
          _
        // Predicated region
        $region33: #{tpu_custom_call.1} parent=11 // pred_check
          %p260 = pneg %p173
        $region34: #{tpu_custom_call.1} parent=11 // pred_check_branch
          %262 = sbr.rel (%p260) target = $region36
        $region35: #{tpu_custom_call.1} parent=11 // pred_region
          %s264 = ssub.s32 3072, 3072
          %265 = vsyncadd [#allocation6], %s264
          %s266 = sshll.u32 [#allocation7], 4
          %s267 = int_to_ptr.vmem [resolvable:$true] %s266
          %272 = dma.hbm_to_vmem [thread:$0]  %s6, 3072, %s267, [#allocation6], 64, 64, 4
        $region36: #{tpu_custom_call.1} parent=11 // pred_fallthru
          _
        // Predicated region
        $region37: #{tpu_custom_call.1} parent=11 // pred_check
          %p273 = pneg %p194
        $region38: #{tpu_custom_call.1} parent=11 // pred_check_branch
          %275 = sbr.rel (%p273) target = $region40
        $region39: #{tpu_custom_call.1} parent=11 // pred_region
          _
        $region40: #{tpu_custom_call.1} parent=11 // pred_fallthru
          _
      $region12: #{tpu_custom_call.1} parent=5 // pred_fallthru
        _
      %p276 = scmp.lt.s32.totalorder %s21, 2
      // Predicated region
      $region41: #{tpu_custom_call.1} parent=5 // pred_check
        %p277 = pneg %p276
      $region42: #{tpu_custom_call.1} parent=5 // pred_check_branch
        %279 = sbr.rel (%p277) target = $region44
      $region43: #{tpu_custom_call.1} parent=5 // pred_region
        // Predicated region
        $region45: #{tpu_custom_call.1} parent=43 // pred_check
          %p280 = pneg %p41
        $region46: #{tpu_custom_call.1} parent=43 // pred_check_branch
          %282 = sbr.rel (%p280) target = $region48
        $region47: #{tpu_custom_call.1} parent=43 // pred_region
          %s283 = sand.u32 %s31, 1
          %s284 = scalar_lea.sflag [#allocation3], %s283
          %s285 = sand.u32 %s31, 1
          %s286 = smul.addr %s285, 16
          %s287 = scalar_lea.vmem [#allocation2], %s286
          %s288 = smul.u32 2, %s21
          %s290 = ssub.s32 256, 256
          %291 = vsyncadd %s284, %s290
          %s292 = smul.addr %s288, 128
          %s293 = scalar_lea.hbm %s0, %s292
          %s294 = sshll.u32 %s287, 4
          %s295 = int_to_ptr.vmem [resolvable:$true] %s294
          %300 = dma.hbm_to_vmem [thread:$0]  %s293, 256, %s295, %s284, 128, 128, 8
        $region48: #{tpu_custom_call.1} parent=43 // pred_fallthru
          _
      $region44: #{tpu_custom_call.1} parent=5 // pred_fallthru
        _
      %p301 = scmp.le.s32.totalorder 1, %s21
      %p302 = scmp.lt.s32.totalorder %s21, 3
      %p303 = pnand %p301, %p302
      %p304 = pneg %p303
      // Predicated region
      $region49: #{tpu_custom_call.1} parent=5 // pred_check
        _
      $region50: #{tpu_custom_call.1} parent=5 // pred_check_branch
        %306 = sbr.rel (%p303) target = $region52
      $region51: #{tpu_custom_call.1} parent=5 // pred_region
        %s307 = ssub.s32 %s21, 1
        %s308 = sand.u32 %s34, 1
        %s309 = scalar_lea.sflag [#allocation3], %s308
        %s310 = sand.u32 %s34, 1
        %s311 = smul.addr %s310, 16
        %s312 = scalar_lea.vmem [#allocation2], %s311
        // Predicated region
        $region53: #{tpu_custom_call.1} parent=51 // pred_check
          %p313 = pneg %p47
        $region54: #{tpu_custom_call.1} parent=51 // pred_check_branch
          %315 = sbr.rel (%p313) target = $region56
        $region55: #{tpu_custom_call.1} parent=51 // pred_region
          %316 = dma.done %s309, 256
        $region56: #{tpu_custom_call.1} parent=51 // pred_fallthru
          _
        // Predicated region
        $region57: #{tpu_custom_call.1} parent=51 // pred_check
          %p317 = pneg %p110
        $region58: #{tpu_custom_call.1} parent=51 // pred_check_branch
          %319 = sbr.rel (%p317) target = $region60
        $region59: #{tpu_custom_call.1} parent=51 // pred_region
          %320 = dma.done [#allocation6], 3072
        $region60: #{tpu_custom_call.1} parent=51 // pred_fallthru
          _
        // Predicated region
        $region61: #{tpu_custom_call.1} parent=51 // pred_check
          %p321 = pneg %p173
        $region62: #{tpu_custom_call.1} parent=51 // pred_check_branch
          %323 = sbr.rel (%p321) target = $region64
        $region63: #{tpu_custom_call.1} parent=51 // pred_region
          %324 = dma.done [#allocation6], 3072
        $region64: #{tpu_custom_call.1} parent=51 // pred_fallthru
          _
        %s325 = sand.u32 %s34, 1
        %s326 = scalar_lea.sflag [#allocation3], %s325
        %s327 = sand.u32 %s34, 1
        %s328 = smul.addr %s327, 16
        %s329 = scalar_lea.vmem [#allocation2], %s328
        %p330 = pneg %p47
        %p331 = pneg %p44
        %p332 = pneg %p68
        %p333 = pneg %p65
        %p334 = pneg %p89
        %p335 = pneg %p86
        %p336 = pneg %p110
        %p337 = pneg %p107
        %p338 = pneg %p131
        %p339 = pneg %p128
        %p340 = pneg %p152
        %p341 = pneg %p149
        %p342 = pneg %p173
        %p343 = pneg %p170
        %p344 = pneg %p194
        %p345 = pneg %p191
        %p346 = pneg %p220
        %p347 = pneg %p217
        %s348 = sand.u32 %s207, 1
        %s349 = scalar_lea.sflag [#allocation4], %s348
        %s350 = sand.u32 %s207, 1
        %s351 = smul.addr %s350, 16
        %s352 = scalar_lea.vmem [#allocation8], %s351
        %s353 = smul.u32 2, %s26
        %s354 = smul.u32 2, %s26
        %v356 = vld [vmem:[%s312] sm:$0xff]
        %v357 = vld [vmem:[%s312 + $0x8] sm:$0xff]
        %v358 = vlaneseq
        %v359 = vshrl.u32 %v358, 7
        %v360 = vadd.s32 %v359, 8
        %vm361 = vcmp.lt.s32.totalorder %v359, 0
        %v362 = vsub.s32 0, %v359
        %v363 = vsel %vm361, %v362, %v359
        %v364 = vshrl.u32 %v363, 4
        %v365 = vand.u32 %v363, 15
        %v366 = vsub.s32 0, %v365
        %v367 = vsel %vm361, %v366, %v365
        %vm368 = vcmp.lt.s32.totalorder %v360, 0
        %v369 = vsub.s32 0, %v360
        %v370 = vsel %vm368, %v369, %v360
        %v371 = vshrl.u32 %v370, 4
        %v372 = vand.u32 %v370, 15
        %v373 = vsub.s32 0, %v372
        %v374 = vsel %vm368, %v373, %v372
        %vm375 = vcmp.ne.s32.totalorder %v367, 0
        %vm376 = vcmp.ne.s32.totalorder %v374, 0
        %vm377 = vcmp.lt.s32.totalorder %v367, 0
        %vm378 = vcmp.lt.s32.totalorder %v374, 0
        %vm379 = vmand %vm377, %vm375
        %vm380 = vmand %vm378, %vm376
        %v381 = vadd.s32 %v367, 16
        %v382 = vadd.s32 %v374, 16
        %v383 = vsel %vm379, %v381, %v367
        %v384 = vsel %vm380, %v382, %v374
        %vm385 = vcmp.ne.s32.totalorder %v383, 0
        %vm386 = vcmp.ne.s32.totalorder %v384, 0
        %v387 = vsel %vm385, 1, 0
        %v388 = vsel %vm386, 1, 0
        %v389 = vcvt.s32.f32 %v387
        %v390 = vcvt.s32.f32 %v388
        %vm391 = vcmp.ne.s32.totalorder %v383, 15
        %vm392 = vcmp.ne.s32.totalorder %v384, 15
        %v393 = vsel %vm391, 1, 0
        %v394 = vsel %vm392, 1, 0
        %v395 = vcvt.s32.f32 %v393
        %v396 = vcvt.s32.f32 %v394
        %v397 = vld [vmem:[%s1] sm:$0x1]
        %v399 = vlaneseq
        %v400 = vshrl.u32 %v399, 7
        %v401 = vsub.s32 0, %v400
        %v402 = vrot.slane %v397, %v401
        %v404 = vmul.f32 %v356, %v402
        %v405 = vmul.f32 %v357, %v402
        %v406 = vld [vmem:[%s2] sm:$0x1]
        %v408 = vlaneseq
        %v409 = vshrl.u32 %v408, 7
        %v410 = vsub.s32 0, %v409
        %v411 = vrot.slane %v406, %v410
        %v413 = vadd.f32 %v404, %v411
        %v414 = vadd.f32 %v405, %v411
        %v415 = vmax.f32 %v413, 0.0
        %v416 = vmax.f32 %v414, 0.0
        %v417 = vrot.slane %v415, 7
        %v418 = vrot.slane %v416, 7
        %vm419 = vcmp.lt.s32.totalorder %v359, 1
        %v420 = vsel %vm419, %v417, %v418
        %v421 = vsel %vm419, %v418, %v417
        %v422 = vmul.f32 %v389, %v421
        %v423 = vmul.f32 %v390, %v420
        %v424 = vpack.c.bf16 %v423, %v422
        %v425 = vrot.slane %v415, 1
        %v426 = vrot.slane %v416, 1
        %vm427 = vcmp.lt.s32.totalorder %v359, 7
        %v428 = vsel %vm427, %v425, %v426
        %v429 = vsel %vm427, %v426, %v425
        %v430 = vmul.f32 %v395, %v428
        %v431 = vmul.f32 %v396, %v429
        %v432 = vpack.c.bf16 %v431, %v430
        %v433 = vpack.c.bf16 %v416, %v415
        %v434 = vld [vmem:[#allocation5] sm:$0xf]
        %v435 = vld [vmem:[#allocation5 + $0x4] sm:$0xf]
        %v436 = vld [vmem:[#allocation5 + $0x8] sm:$0xf]
        %v437 = vld [vmem:[#allocation5 + $0xc] sm:$0xf]
        %v438 = vld [vmem:[#allocation5 + $0x10] sm:$0xf]
        %v439 = vld [vmem:[#allocation5 + $0x14] sm:$0xf]
        %v440 = vld [vmem:[#allocation5 + $0x18] sm:$0xf]
        %v441 = vld [vmem:[#allocation5 + $0x1c] sm:$0xf]
        %v442 = vld [vmem:[#allocation5 + $0x20] sm:$0xf]
        %v443 = vld [vmem:[#allocation5 + $0x24] sm:$0xf]
        %v444 = vld [vmem:[#allocation5 + $0x28] sm:$0xf]
        %v445 = vld [vmem:[#allocation5 + $0x2c] sm:$0xf]
        %v446 = vld [vmem:[#allocation5 + $0x30] sm:$0xf]
        %v447 = vld [vmem:[#allocation5 + $0x34] sm:$0xf]
        %v448 = vld [vmem:[#allocation5 + $0x38] sm:$0xf]
        %v449 = vld [vmem:[#allocation5 + $0x3c] sm:$0xf]
        %v450 = vld [vmem:[#allocation5 + $0x40] sm:$0xf]
        %v451 = vld [vmem:[#allocation5 + $0x44] sm:$0xf]
        %v452 = vld [vmem:[#allocation5 + $0x48] sm:$0xf]
        %v453 = vld [vmem:[#allocation5 + $0x4c] sm:$0xf]
        %v454 = vld [vmem:[#allocation5 + $0x50] sm:$0xf]
        %v455 = vld [vmem:[#allocation5 + $0x54] sm:$0xf]
        %v456 = vld [vmem:[#allocation5 + $0x58] sm:$0xf]
        %v457 = vld [vmem:[#allocation5 + $0x5c] sm:$0xf]
        %v458 = vld [vmem:[#allocation5 + $0x60] sm:$0xf]
        %v459 = vld [vmem:[#allocation5 + $0x64] sm:$0xf]
        %v460 = vld [vmem:[#allocation5 + $0x68] sm:$0xf]
        %v461 = vld [vmem:[#allocation5 + $0x6c] sm:$0xf]
        %v462 = vld [vmem:[#allocation5 + $0x70] sm:$0xf]
        %v463 = vld [vmem:[#allocation5 + $0x74] sm:$0xf]
        %v464 = vld [vmem:[#allocation5 + $0x78] sm:$0xf]
        %v465 = vld [vmem:[#allocation5 + $0x7c] sm:$0xf]
        %v482 = vunpack.c.l.b16 %v450
        %v483 = vunpack.c.l.b16 %v451
        %v484 = vunpack.c.l.b16 %v452
        %v485 = vunpack.c.l.b16 %v453
        %v486 = vunpack.c.l.b16 %v454
        %v487 = vunpack.c.l.b16 %v455
        %v488 = vunpack.c.l.b16 %v456
        %v489 = vunpack.c.l.b16 %v457
        %v490 = vunpack.c.l.b16 %v458
        %v491 = vunpack.c.l.b16 %v459
        %v492 = vunpack.c.l.b16 %v460
        %v493 = vunpack.c.l.b16 %v461
        %v494 = vunpack.c.l.b16 %v462
        %v495 = vunpack.c.l.b16 %v463
        %v496 = vunpack.c.l.b16 %v464
        %v497 = vunpack.c.l.b16 %v465
        %v498 = vpack.c.b16 %v483, %v482
        %v499 = vpack.c.b16 %v485, %v484
        %v500 = vpack.c.b16 %v487, %v486
        %v501 = vpack.c.b16 %v489, %v488
        %v502 = vpack.c.b16 %v491, %v490
        %v503 = vpack.c.b16 %v493, %v492
        %v504 = vpack.c.b16 %v495, %v494
        %v505 = vpack.c.b16 %v497, %v496
        %514 = vmatprep.subr.bf16.mxu0 0
        %515 = vmatpush1.bf16.msra.mxu0 %v505
        %516 = vmatprep.subr.bf16.mxu0 0
        %517 = vmatpush1.bf16.msra.mxu0 %v504
        %518 = vmatprep.subr.bf16.mxu0 0
        %519 = vmatpush1.bf16.msra.mxu0 %v503
        %520 = vmatprep.subr.bf16.mxu0 0
        %521 = vmatpush1.bf16.msra.mxu0 %v502
        %522 = vmatprep.subr.bf16.mxu0 0
        %523 = vmatpush1.bf16.msra.mxu0 %v501
        %524 = vmatprep.subr.bf16.mxu0 0
        %525 = vmatpush1.bf16.msra.mxu0 %v500
        %526 = vmatprep.subr.bf16.mxu0 0
        %527 = vmatpush1.bf16.msra.mxu0 %v499
        %528 = vmatprep.subr.bf16.mxu0 0
        %529 = vmatpush1.bf16.msra.mxu0 %v498
        %530 = vmatprep.subr.bf16.mxu0 0
        %531 = vmatpush2.bf16.msra.mxu0 0
        %532 = vmatprep.subr.bf16.mxu0 0
        %533 = vmatpush2.bf16.msra.mxu0 0
        %534 = vmatprep.subr.bf16.mxu0 0
        %535 = vmatpush2.bf16.msra.mxu0 0
        %536 = vmatprep.subr.bf16.mxu0 0
        %537 = vmatpush2.bf16.msra.mxu0 0
        %538 = vmatprep.subr.bf16.mxu0 0
        %539 = vmatpush2.bf16.msra.mxu0 0
        %540 = vmatprep.subr.bf16.mxu0 0
        %541 = vmatpush2.bf16.msra.mxu0 0
        %542 = vmatprep.subr.bf16.mxu0 0
        %543 = vmatpush2.bf16.msra.mxu0 0
        %544 = vmatprep.subr.bf16.mxu0 0
        %545 = vmatpush2.bf16.msra.mxu0 0
        %546 = vmatprep.mubr.bf16.mxu0 0
        %547 = vmatmul.mubr.bf16.gmra.mxu0 %v433
        %v548 = vpop.f32.mrf.mxu0
        %v549 = vadd.f32 0.0, %v548
        %v550 = vpop.f32.mrf.mxu0
        %v551 = vpop.f32.mrf.mxu0
        %v552 = vadd.f32 0.0, %v551
        %v553 = vpop.f32.mrf.mxu0
        %554 = vdwg.mxu0
        %v571 = vunpack.c.l.b16 %v434
        %v572 = vunpack.c.l.b16 %v435
        %v573 = vunpack.c.l.b16 %v436
        %v574 = vunpack.c.l.b16 %v437
        %v575 = vunpack.c.l.b16 %v438
        %v576 = vunpack.c.l.b16 %v439
        %v577 = vunpack.c.l.b16 %v440
        %v578 = vunpack.c.l.b16 %v441
        %v579 = vunpack.c.l.b16 %v442
        %v580 = vunpack.c.l.b16 %v443
        %v581 = vunpack.c.l.b16 %v444
        %v582 = vunpack.c.l.b16 %v445
        %v583 = vunpack.c.l.b16 %v446
        %v584 = vunpack.c.l.b16 %v447
        %v585 = vunpack.c.l.b16 %v448
        %v586 = vunpack.c.l.b16 %v449
        %v587 = vpack.c.b16 %v572, %v571
        %v588 = vpack.c.b16 %v574, %v573
        %v589 = vpack.c.b16 %v576, %v575
        %v590 = vpack.c.b16 %v578, %v577
        %v591 = vpack.c.b16 %v580, %v579
        %v592 = vpack.c.b16 %v582, %v581
        %v593 = vpack.c.b16 %v584, %v583
        %v594 = vpack.c.b16 %v586, %v585
        %603 = vmatprep.subr.bf16.mxu0 0
        %604 = vmatpush1.bf16.msra.mxu0 %v594
        %605 = vmatprep.subr.bf16.mxu0 0
        %606 = vmatpush1.bf16.msra.mxu0 %v593
        %607 = vmatprep.subr.bf16.mxu0 0
        %608 = vmatpush1.bf16.msra.mxu0 %v592
        %609 = vmatprep.subr.bf16.mxu0 0
        %610 = vmatpush1.bf16.msra.mxu0 %v591
        %611 = vmatprep.subr.bf16.mxu0 0
        %612 = vmatpush1.bf16.msra.mxu0 %v590
        %613 = vmatprep.subr.bf16.mxu0 0
        %614 = vmatpush1.bf16.msra.mxu0 %v589
        %615 = vmatprep.subr.bf16.mxu0 0
        %616 = vmatpush1.bf16.msra.mxu0 %v588
        %617 = vmatprep.subr.bf16.mxu0 0
        %618 = vmatpush1.bf16.msra.mxu0 %v587
        %619 = vmatprep.subr.bf16.mxu0 0
        %620 = vmatpush2.bf16.msra.mxu0 0
        %621 = vmatprep.subr.bf16.mxu0 0
        %622 = vmatpush2.bf16.msra.mxu0 0
        %623 = vmatprep.subr.bf16.mxu0 0
        %624 = vmatpush2.bf16.msra.mxu0 0
        %625 = vmatprep.subr.bf16.mxu0 0
        %626 = vmatpush2.bf16.msra.mxu0 0
        %627 = vmatprep.subr.bf16.mxu0 0
        %628 = vmatpush2.bf16.msra.mxu0 0
        %629 = vmatprep.subr.bf16.mxu0 0
        %630 = vmatpush2.bf16.msra.mxu0 0
        %631 = vmatprep.subr.bf16.mxu0 0
        %632 = vmatpush2.bf16.msra.mxu0 0
        %633 = vmatprep.subr.bf16.mxu0 0
        %634 = vmatpush2.bf16.msra.mxu0 0
        %635 = vmatprep.mubr.bf16.mxu0 0
        %636 = vmatmul.mubr.bf16.gmra.mxu0 %v424
        %v637 = vpop.f32.mrf.mxu0
        %v638 = vadd.f32 %v549, %v637
        %v639 = vpop.f32.mrf.mxu0
        %v640 = vpop.f32.mrf.mxu0
        %v641 = vadd.f32 %v552, %v640
        %v642 = vpop.f32.mrf.mxu0
        %643 = vdwg.mxu0
        %v644 = vld [vmem:[#allocation5 + $0x80] sm:$0xf]
        %v645 = vld [vmem:[#allocation5 + $0x84] sm:$0xf]
        %v646 = vld [vmem:[#allocation5 + $0x88] sm:$0xf]
        %v647 = vld [vmem:[#allocation5 + $0x8c] sm:$0xf]
        %v648 = vld [vmem:[#allocation5 + $0x90] sm:$0xf]
        %v649 = vld [vmem:[#allocation5 + $0x94] sm:$0xf]
        %v650 = vld [vmem:[#allocation5 + $0x98] sm:$0xf]
        %v651 = vld [vmem:[#allocation5 + $0x9c] sm:$0xf]
        %v652 = vld [vmem:[#allocation5 + $0xa0] sm:$0xf]
        %v653 = vld [vmem:[#allocation5 + $0xa4] sm:$0xf]
        %v654 = vld [vmem:[#allocation5 + $0xa8] sm:$0xf]
        %v655 = vld [vmem:[#allocation5 + $0xac] sm:$0xf]
        %v656 = vld [vmem:[#allocation5 + $0xb0] sm:$0xf]
        %v657 = vld [vmem:[#allocation5 + $0xb4] sm:$0xf]
        %v658 = vld [vmem:[#allocation5 + $0xb8] sm:$0xf]
        %v659 = vld [vmem:[#allocation5 + $0xbc] sm:$0xf]
        %v676 = vunpack.c.l.b16 %v644
        %v677 = vunpack.c.l.b16 %v645
        %v678 = vunpack.c.l.b16 %v646
        %v679 = vunpack.c.l.b16 %v647
        %v680 = vunpack.c.l.b16 %v648
        %v681 = vunpack.c.l.b16 %v649
        %v682 = vunpack.c.l.b16 %v650
        %v683 = vunpack.c.l.b16 %v651
        %v684 = vunpack.c.l.b16 %v652
        %v685 = vunpack.c.l.b16 %v653
        %v686 = vunpack.c.l.b16 %v654
        %v687 = vunpack.c.l.b16 %v655
        %v688 = vunpack.c.l.b16 %v656
        %v689 = vunpack.c.l.b16 %v657
        %v690 = vunpack.c.l.b16 %v658
        %v691 = vunpack.c.l.b16 %v659
        %v692 = vpack.c.b16 %v677, %v676
        %v693 = vpack.c.b16 %v679, %v678
        %v694 = vpack.c.b16 %v681, %v680
        %v695 = vpack.c.b16 %v683, %v682
        %v696 = vpack.c.b16 %v685, %v684
        %v697 = vpack.c.b16 %v687, %v686
        %v698 = vpack.c.b16 %v689, %v688
        %v699 = vpack.c.b16 %v691, %v690
        %708 = vmatprep.subr.bf16.mxu0 0
        %709 = vmatpush1.bf16.msra.mxu0 %v699
        %710 = vmatprep.subr.bf16.mxu0 0
        %711 = vmatpush1.bf16.msra.mxu0 %v698
        %712 = vmatprep.subr.bf16.mxu0 0
        %713 = vmatpush1.bf16.msra.mxu0 %v697
        %714 = vmatprep.subr.bf16.mxu0 0
        %715 = vmatpush1.bf16.msra.mxu0 %v696
        %716 = vmatprep.subr.bf16.mxu0 0
        %717 = vmatpush1.bf16.msra.mxu0 %v695
        %718 = vmatprep.subr.bf16.mxu0 0
        %719 = vmatpush1.bf16.msra.mxu0 %v694
        %720 = vmatprep.subr.bf16.mxu0 0
        %721 = vmatpush1.bf16.msra.mxu0 %v693
        %722 = vmatprep.subr.bf16.mxu0 0
        %723 = vmatpush1.bf16.msra.mxu0 %v692
        %724 = vmatprep.subr.bf16.mxu0 0
        %725 = vmatpush2.bf16.msra.mxu0 0
        %726 = vmatprep.subr.bf16.mxu0 0
        %727 = vmatpush2.bf16.msra.mxu0 0
        %728 = vmatprep.subr.bf16.mxu0 0
        %729 = vmatpush2.bf16.msra.mxu0 0
        %730 = vmatprep.subr.bf16.mxu0 0
        %731 = vmatpush2.bf16.msra.mxu0 0
        %732 = vmatprep.subr.bf16.mxu0 0
        %733 = vmatpush2.bf16.msra.mxu0 0
        %734 = vmatprep.subr.bf16.mxu0 0
        %735 = vmatpush2.bf16.msra.mxu0 0
        %736 = vmatprep.subr.bf16.mxu0 0
        %737 = vmatpush2.bf16.msra.mxu0 0
        %738 = vmatprep.subr.bf16.mxu0 0
        %739 = vmatpush2.bf16.msra.mxu0 0
        %740 = vmatprep.mubr.bf16.mxu0 0
        %741 = vmatmul.mubr.bf16.gmra.mxu0 %v432
        %v742 = vpop.f32.mrf.mxu0
        %v743 = vadd.f32 0.0, %v742
        %v744 = vpop.f32.mrf.mxu0
        %v745 = vpop.f32.mrf.mxu0
        %v746 = vadd.f32 0.0, %v745
        %v747 = vpop.f32.mrf.mxu0
        %748 = vdwg.mxu0
        %v749 = vadd.f32 %v638, %v743
        %v750 = vadd.f32 %v641, %v746
        %v751 = vld [vmem:[%s4] sm:$0x1]
        %v753 = vlaneseq
        %v754 = vshrl.u32 %v753, 7
        %v755 = vsub.s32 0, %v754
        %v756 = vrot.slane %v751, %v755
        %v758 = vmul.f32 %v749, %v756
        %v759 = vmul.f32 %v750, %v756
        %v760 = vld [vmem:[%s5] sm:$0x1]
        %v762 = vlaneseq
        %v763 = vshrl.u32 %v762, 7
        %v764 = vsub.s32 0, %v763
        %v765 = vrot.slane %v760, %v764
        %v767 = vadd.f32 %v758, %v765
        %v768 = vadd.f32 %v759, %v765
        %v769 = vmax.f32 %v767, 0.0
        %v770 = vmax.f32 %v768, 0.0
        %v771 = vrot.slane %v769, 7
        %v772 = vrot.slane %v770, 7
        %v773 = vsel %vm419, %v771, %v772
        %v774 = vsel %vm419, %v772, %v771
        %v775 = vmul.f32 %v389, %v774
        %v776 = vmul.f32 %v390, %v773
        %v777 = vpack.c.bf16 %v776, %v775
        %v778 = vrot.slane %v769, 1
        %v779 = vrot.slane %v770, 1
        %v780 = vsel %vm427, %v778, %v779
        %v781 = vsel %vm427, %v779, %v778
        %v782 = vmul.f32 %v395, %v780
        %v783 = vmul.f32 %v396, %v781
        %v784 = vpack.c.bf16 %v783, %v782
        %v785 = vpack.c.bf16 %v770, %v769
        %v786 = vld [vmem:[#allocation7] sm:$0xf]
        %v787 = vld [vmem:[#allocation7 + $0x4] sm:$0xf]
        %v788 = vld [vmem:[#allocation7 + $0x8] sm:$0xf]
        %v789 = vld [vmem:[#allocation7 + $0xc] sm:$0xf]
        %v790 = vld [vmem:[#allocation7 + $0x10] sm:$0xf]
        %v791 = vld [vmem:[#allocation7 + $0x14] sm:$0xf]
        %v792 = vld [vmem:[#allocation7 + $0x18] sm:$0xf]
        %v793 = vld [vmem:[#allocation7 + $0x1c] sm:$0xf]
        %v794 = vld [vmem:[#allocation7 + $0x20] sm:$0xf]
        %v795 = vld [vmem:[#allocation7 + $0x24] sm:$0xf]
        %v796 = vld [vmem:[#allocation7 + $0x28] sm:$0xf]
        %v797 = vld [vmem:[#allocation7 + $0x2c] sm:$0xf]
        %v798 = vld [vmem:[#allocation7 + $0x30] sm:$0xf]
        %v799 = vld [vmem:[#allocation7 + $0x34] sm:$0xf]
        %v800 = vld [vmem:[#allocation7 + $0x38] sm:$0xf]
        %v801 = vld [vmem:[#allocation7 + $0x3c] sm:$0xf]
        %v802 = vld [vmem:[#allocation7 + $0x40] sm:$0xf]
        %v803 = vld [vmem:[#allocation7 + $0x44] sm:$0xf]
        %v804 = vld [vmem:[#allocation7 + $0x48] sm:$0xf]
        %v805 = vld [vmem:[#allocation7 + $0x4c] sm:$0xf]
        %v806 = vld [vmem:[#allocation7 + $0x50] sm:$0xf]
        %v807 = vld [vmem:[#allocation7 + $0x54] sm:$0xf]
        %v808 = vld [vmem:[#allocation7 + $0x58] sm:$0xf]
        %v809 = vld [vmem:[#allocation7 + $0x5c] sm:$0xf]
        %v810 = vld [vmem:[#allocation7 + $0x60] sm:$0xf]
        %v811 = vld [vmem:[#allocation7 + $0x64] sm:$0xf]
        %v812 = vld [vmem:[#allocation7 + $0x68] sm:$0xf]
        %v813 = vld [vmem:[#allocation7 + $0x6c] sm:$0xf]
        %v814 = vld [vmem:[#allocation7 + $0x70] sm:$0xf]
        %v815 = vld [vmem:[#allocation7 + $0x74] sm:$0xf]
        %v816 = vld [vmem:[#allocation7 + $0x78] sm:$0xf]
        %v817 = vld [vmem:[#allocation7 + $0x7c] sm:$0xf]
        %v834 = vunpack.c.l.b16 %v802
        %v835 = vunpack.c.l.b16 %v803
        %v836 = vunpack.c.l.b16 %v804
        %v837 = vunpack.c.l.b16 %v805
        %v838 = vunpack.c.l.b16 %v806
        %v839 = vunpack.c.l.b16 %v807
        %v840 = vunpack.c.l.b16 %v808
        %v841 = vunpack.c.l.b16 %v809
        %v842 = vunpack.c.l.b16 %v810
        %v843 = vunpack.c.l.b16 %v811
        %v844 = vunpack.c.l.b16 %v812
        %v845 = vunpack.c.l.b16 %v813
        %v846 = vunpack.c.l.b16 %v814
        %v847 = vunpack.c.l.b16 %v815
        %v848 = vunpack.c.l.b16 %v816
        %v849 = vunpack.c.l.b16 %v817
        %v850 = vpack.c.b16 %v835, %v834
        %v851 = vpack.c.b16 %v837, %v836
        %v852 = vpack.c.b16 %v839, %v838
        %v853 = vpack.c.b16 %v841, %v840
        %v854 = vpack.c.b16 %v843, %v842
        %v855 = vpack.c.b16 %v845, %v844
        %v856 = vpack.c.b16 %v847, %v846
        %v857 = vpack.c.b16 %v849, %v848
        %866 = vmatprep.subr.bf16.mxu0 0
        %867 = vmatpush1.bf16.msra.mxu0 %v857
        %868 = vmatprep.subr.bf16.mxu0 0
        %869 = vmatpush1.bf16.msra.mxu0 %v856
        %870 = vmatprep.subr.bf16.mxu0 0
        %871 = vmatpush1.bf16.msra.mxu0 %v855
        %872 = vmatprep.subr.bf16.mxu0 0
        %873 = vmatpush1.bf16.msra.mxu0 %v854
        %874 = vmatprep.subr.bf16.mxu0 0
        %875 = vmatpush1.bf16.msra.mxu0 %v853
        %876 = vmatprep.subr.bf16.mxu0 0
        %877 = vmatpush1.bf16.msra.mxu0 %v852
        %878 = vmatprep.subr.bf16.mxu0 0
        %879 = vmatpush1.bf16.msra.mxu0 %v851
        %880 = vmatprep.subr.bf16.mxu0 0
        %881 = vmatpush1.bf16.msra.mxu0 %v850
        %882 = vmatprep.subr.bf16.mxu0 0
        %883 = vmatpush2.bf16.msra.mxu0 0
        %884 = vmatprep.subr.bf16.mxu0 0
        %885 = vmatpush2.bf16.msra.mxu0 0
        %886 = vmatprep.subr.bf16.mxu0 0
        %887 = vmatpush2.bf16.msra.mxu0 0
        %888 = vmatprep.subr.bf16.mxu0 0
        %889 = vmatpush2.bf16.msra.mxu0 0
        %890 = vmatprep.subr.bf16.mxu0 0
        %891 = vmatpush2.bf16.msra.mxu0 0
        %892 = vmatprep.subr.bf16.mxu0 0
        %893 = vmatpush2.bf16.msra.mxu0 0
        %894 = vmatprep.subr.bf16.mxu0 0
        %895 = vmatpush2.bf16.msra.mxu0 0
        %896 = vmatprep.subr.bf16.mxu0 0
        %897 = vmatpush2.bf16.msra.mxu0 0
        %898 = vmatprep.mubr.bf16.mxu0 0
        %899 = vmatmul.mubr.bf16.gmra.mxu0 %v785
        %v900 = vpop.f32.mrf.mxu0
        %v901 = vadd.f32 0.0, %v900
        %v902 = vpop.f32.mrf.mxu0
        %v903 = vpop.f32.mrf.mxu0
        %v904 = vadd.f32 0.0, %v903
        %v905 = vpop.f32.mrf.mxu0
        %906 = vdwg.mxu0
        %v923 = vunpack.c.l.b16 %v786
        %v924 = vunpack.c.l.b16 %v787
        %v925 = vunpack.c.l.b16 %v788
        %v926 = vunpack.c.l.b16 %v789
        %v927 = vunpack.c.l.b16 %v790
        %v928 = vunpack.c.l.b16 %v791
        %v929 = vunpack.c.l.b16 %v792
        %v930 = vunpack.c.l.b16 %v793
        %v931 = vunpack.c.l.b16 %v794
        %v932 = vunpack.c.l.b16 %v795
        %v933 = vunpack.c.l.b16 %v796
        %v934 = vunpack.c.l.b16 %v797
        %v935 = vunpack.c.l.b16 %v798
        %v936 = vunpack.c.l.b16 %v799
        %v937 = vunpack.c.l.b16 %v800
        %v938 = vunpack.c.l.b16 %v801
        %v939 = vpack.c.b16 %v924, %v923
        %v940 = vpack.c.b16 %v926, %v925
        %v941 = vpack.c.b16 %v928, %v927
        %v942 = vpack.c.b16 %v930, %v929
        %v943 = vpack.c.b16 %v932, %v931
        %v944 = vpack.c.b16 %v934, %v933
        %v945 = vpack.c.b16 %v936, %v935
        %v946 = vpack.c.b16 %v938, %v937
        %955 = vmatprep.subr.bf16.mxu0 0
        %956 = vmatpush1.bf16.msra.mxu0 %v946
        %957 = vmatprep.subr.bf16.mxu0 0
        %958 = vmatpush1.bf16.msra.mxu0 %v945
        %959 = vmatprep.subr.bf16.mxu0 0
        %960 = vmatpush1.bf16.msra.mxu0 %v944
        %961 = vmatprep.subr.bf16.mxu0 0
        %962 = vmatpush1.bf16.msra.mxu0 %v943
        %963 = vmatprep.subr.bf16.mxu0 0
        %964 = vmatpush1.bf16.msra.mxu0 %v942
        %965 = vmatprep.subr.bf16.mxu0 0
        %966 = vmatpush1.bf16.msra.mxu0 %v941
        %967 = vmatprep.subr.bf16.mxu0 0
        %968 = vmatpush1.bf16.msra.mxu0 %v940
        %969 = vmatprep.subr.bf16.mxu0 0
        %970 = vmatpush1.bf16.msra.mxu0 %v939
        %971 = vmatprep.subr.bf16.mxu0 0
        %972 = vmatpush2.bf16.msra.mxu0 0
        %973 = vmatprep.subr.bf16.mxu0 0
        %974 = vmatpush2.bf16.msra.mxu0 0
        %975 = vmatprep.subr.bf16.mxu0 0
        %976 = vmatpush2.bf16.msra.mxu0 0
        %977 = vmatprep.subr.bf16.mxu0 0
        %978 = vmatpush2.bf16.msra.mxu0 0
        %979 = vmatprep.subr.bf16.mxu0 0
        %980 = vmatpush2.bf16.msra.mxu0 0
        %981 = vmatprep.subr.bf16.mxu0 0
        %982 = vmatpush2.bf16.msra.mxu0 0
        %983 = vmatprep.subr.bf16.mxu0 0
        %984 = vmatpush2.bf16.msra.mxu0 0
        %985 = vmatprep.subr.bf16.mxu0 0
        %986 = vmatpush2.bf16.msra.mxu0 0
        %987 = vmatprep.mubr.bf16.mxu0 0
        %988 = vmatmul.mubr.bf16.gmra.mxu0 %v777
        %v989 = vpop.f32.mrf.mxu0
        %v990 = vadd.f32 %v901, %v989
        %v991 = vpop.f32.mrf.mxu0
        %v992 = vpop.f32.mrf.mxu0
        %v993 = vadd.f32 %v904, %v992
        %v994 = vpop.f32.mrf.mxu0
        %995 = vdwg.mxu0
        %v996 = vld [vmem:[#allocation7 + $0x80] sm:$0xf]
        %v997 = vld [vmem:[#allocation7 + $0x84] sm:$0xf]
        %v998 = vld [vmem:[#allocation7 + $0x88] sm:$0xf]
        %v999 = vld [vmem:[#allocation7 + $0x8c] sm:$0xf]
        %v1000 = vld [vmem:[#allocation7 + $0x90] sm:$0xf]
        %v1001 = vld [vmem:[#allocation7 + $0x94] sm:$0xf]
        %v1002 = vld [vmem:[#allocation7 + $0x98] sm:$0xf]
        %v1003 = vld [vmem:[#allocation7 + $0x9c] sm:$0xf]
        %v1004 = vld [vmem:[#allocation7 + $0xa0] sm:$0xf]
        %v1005 = vld [vmem:[#allocation7 + $0xa4] sm:$0xf]
        %v1006 = vld [vmem:[#allocation7 + $0xa8] sm:$0xf]
        %v1007 = vld [vmem:[#allocation7 + $0xac] sm:$0xf]
        %v1008 = vld [vmem:[#allocation7 + $0xb0] sm:$0xf]
        %v1009 = vld [vmem:[#allocation7 + $0xb4] sm:$0xf]
        %v1010 = vld [vmem:[#allocation7 + $0xb8] sm:$0xf]
        %v1011 = vld [vmem:[#allocation7 + $0xbc] sm:$0xf]
        %v1028 = vunpack.c.l.b16 %v996
        %v1029 = vunpack.c.l.b16 %v997
        %v1030 = vunpack.c.l.b16 %v998
        %v1031 = vunpack.c.l.b16 %v999
        %v1032 = vunpack.c.l.b16 %v1000
        %v1033 = vunpack.c.l.b16 %v1001
        %v1034 = vunpack.c.l.b16 %v1002
        %v1035 = vunpack.c.l.b16 %v1003
        %v1036 = vunpack.c.l.b16 %v1004
        %v1037 = vunpack.c.l.b16 %v1005
        %v1038 = vunpack.c.l.b16 %v1006
        %v1039 = vunpack.c.l.b16 %v1007
        %v1040 = vunpack.c.l.b16 %v1008
        %v1041 = vunpack.c.l.b16 %v1009
        %v1042 = vunpack.c.l.b16 %v1010
        %v1043 = vunpack.c.l.b16 %v1011
        %v1044 = vpack.c.b16 %v1029, %v1028
        %v1045 = vpack.c.b16 %v1031, %v1030
        %v1046 = vpack.c.b16 %v1033, %v1032
        %v1047 = vpack.c.b16 %v1035, %v1034
        %v1048 = vpack.c.b16 %v1037, %v1036
        %v1049 = vpack.c.b16 %v1039, %v1038
        %v1050 = vpack.c.b16 %v1041, %v1040
        %v1051 = vpack.c.b16 %v1043, %v1042
        %1060 = vmatprep.subr.bf16.mxu0 0
        %1061 = vmatpush1.bf16.msra.mxu0 %v1051
        %1062 = vmatprep.subr.bf16.mxu0 0
        %1063 = vmatpush1.bf16.msra.mxu0 %v1050
        %1064 = vmatprep.subr.bf16.mxu0 0
        %1065 = vmatpush1.bf16.msra.mxu0 %v1049
        %1066 = vmatprep.subr.bf16.mxu0 0
        %1067 = vmatpush1.bf16.msra.mxu0 %v1048
        %1068 = vmatprep.subr.bf16.mxu0 0
        %1069 = vmatpush1.bf16.msra.mxu0 %v1047
        %1070 = vmatprep.subr.bf16.mxu0 0
        %1071 = vmatpush1.bf16.msra.mxu0 %v1046
        %1072 = vmatprep.subr.bf16.mxu0 0
        %1073 = vmatpush1.bf16.msra.mxu0 %v1045
        %1074 = vmatprep.subr.bf16.mxu0 0
        %1075 = vmatpush1.bf16.msra.mxu0 %v1044
        %1076 = vmatprep.subr.bf16.mxu0 0
        %1077 = vmatpush2.bf16.msra.mxu0 0
        %1078 = vmatprep.subr.bf16.mxu0 0
        %1079 = vmatpush2.bf16.msra.mxu0 0
        %1080 = vmatprep.subr.bf16.mxu0 0
        %1081 = vmatpush2.bf16.msra.mxu0 0
        %1082 = vmatprep.subr.bf16.mxu0 0
        %1083 = vmatpush2.bf16.msra.mxu0 0
        %1084 = vmatprep.subr.bf16.mxu0 0
        %1085 = vmatpush2.bf16.msra.mxu0 0
        %1086 = vmatprep.subr.bf16.mxu0 0
        %1087 = vmatpush2.bf16.msra.mxu0 0
        %1088 = vmatprep.subr.bf16.mxu0 0
        %1089 = vmatpush2.bf16.msra.mxu0 0
        %1090 = vmatprep.subr.bf16.mxu0 0
        %1091 = vmatpush2.bf16.msra.mxu0 0
        %1092 = vmatprep.mubr.bf16.mxu0 0
        %1093 = vmatmul.mubr.bf16.gmra.mxu0 %v784
        %v1094 = vpop.f32.mrf.mxu0
        %v1095 = vadd.f32 0.0, %v1094
        %v1096 = vpop.f32.mrf.mxu0
        %v1097 = vpop.f32.mrf.mxu0
        %v1098 = vadd.f32 0.0, %v1097
        %v1099 = vpop.f32.mrf.mxu0
        %1100 = vdwg.mxu0
        %v1101 = vadd.f32 %v990, %v1095
        %v1102 = vadd.f32 %v993, %v1098
        %v1103 = vadd.f32 %v356, %v1101
        %v1104 = vadd.f32 %v357, %v1102
        %v1105 = vld [vmem:[%s7] sm:$0x1]
        %v1107 = vlaneseq
        %v1108 = vshrl.u32 %v1107, 7
        %v1109 = vsub.s32 0, %v1108
        %v1110 = vrot.slane %v1105, %v1109
        %v1112 = vadd.f32 %v1103, %v1110
        %v1113 = vadd.f32 %v1104, %v1110
        %1114 = vst [vmem:[%s352] sm:$0xff] %v1112
        %1115 = vst [vmem:[%s352 + $0x8] sm:$0xff] %v1113
        %s1116 = sand.u32 %s207, 1
        %s1117 = scalar_lea.sflag [#allocation4], %s1116
        %s1118 = sand.u32 %s207, 1
        %s1119 = smul.addr %s1118, 16
        %s1120 = scalar_lea.vmem [#allocation8], %s1119
        // Predicated region
        $region65: #{tpu_custom_call.1} parent=51 // pred_check
          %p1121 = pneg %p217
        $region66: #{tpu_custom_call.1} parent=51 // pred_check_branch
          %1123 = sbr.rel (%p1121) target = $region68
        $region67: #{tpu_custom_call.1} parent=51 // pred_region
          %s1124 = smul.u32 2, %s26
          %s1126 = ssub.s32 256, 256
          %1127 = vsyncadd %s1117, %s1126
          %s1128 = smul.addr %s1124, 128
          %s1129 = scalar_lea.hbm %s8, %s1128
          %s1130 = sshll.u32 %s1120, 4
          %s1131 = int_to_ptr.vmem [resolvable:$true] %s1130
          %1136 = dma.vmem_to_hbm [thread:$0]  %s1131, 256, %s1129, %s1117, 128, 128, 8
        $region68: #{tpu_custom_call.1} parent=51 // pred_fallthru
          _
      $region52: #{tpu_custom_call.1} parent=5 // pred_fallthru
        _
      %p1137 = scmp.le.s32.totalorder 2, %s21
      // Predicated region
      $region69: #{tpu_custom_call.1} parent=5 // pred_check
        %p1138 = pneg %p1137
      $region70: #{tpu_custom_call.1} parent=5 // pred_check_branch
        %1140 = sbr.rel (%p1138) target = $region72
      $region71: #{tpu_custom_call.1} parent=5 // pred_region
        %s1141 = ssub.s32 %s21, 2
        // Predicated region
        $region73: #{tpu_custom_call.1} parent=71 // pred_check
          %p1142 = pneg %p223
        $region74: #{tpu_custom_call.1} parent=71 // pred_check_branch
          %1144 = sbr.rel (%p1142) target = $region76
        $region75: #{tpu_custom_call.1} parent=71 // pred_region
          %s1145 = sand.u32 %s208, 1
          %s1146 = scalar_lea.sflag [#allocation4], %s1145
          %s1147 = sand.u32 %s208, 1
          %s1148 = smul.addr %s1147, 16
          %s1149 = scalar_lea.vmem [#allocation8], %s1148
          %1150 = dma.done %s1146, 256
        $region76: #{tpu_custom_call.1} parent=71 // pred_fallthru
          _
      $region72: #{tpu_custom_call.1} parent=5 // pred_fallthru
        _
    $region6: #{tpu_custom_call.1} parent=1 // loop_footer
      %s25 = sadd.s32 1, %s21
    $region7: #{tpu_custom_call.1} parent=1 // loop_footer_branch
      %20 = sbr.rel target = $region3
    $region8: #{tpu_custom_call.1} parent=1 // loop_exit
      _
    %1151 = vsyncpa [#allocation3], 1
    %s1152 = scalar_lea.sflag [#allocation3], 1
    %1153 = vsyncpa %s1152, 1
    %1154 = vsyncpa [#allocation6], 1
    %1155 = vsyncpa [#allocation4], 1
    %s1156 = scalar_lea.sflag [#allocation4], 1
    %1157 = vsyncpa %s1156, 1

// kernel: tpu_custom_call.1
$region0: #{tpu_custom_call.1}
  #allocation0 [shape = 'u32[]', space=smem, size = 0x4, offset = 0x4, fixed_abs, tag = 'smem constant byte address 0x4 - core index']
  #allocation1 [shape = 'u32[144,128]{1,0:T(1,128)}', space=vmem, size = 0x12000, scoped, tag = 'internal scratch']
  %s0 = inlined_call_operand.hbm [shape: f32[32,128], index: 0, kind: input, shape index: {}]
  %s1 = inlined_call_operand.vmem [shape: f32[1,128], index: 1, kind: input, shape index: {}]
  %s2 = inlined_call_operand.vmem [shape: f32[1,128], index: 2, kind: input, shape index: {}]
  %s3 = inlined_call_operand.hbm [shape: bf16[384,128], index: 3, kind: input, shape index: {}]
  %s4 = inlined_call_operand.vmem [shape: f32[1,128], index: 4, kind: input, shape index: {}]
  %s5 = inlined_call_operand.vmem [shape: f32[1,128], index: 5, kind: input, shape index: {}]
  %s6 = inlined_call_operand.hbm [shape: bf16[384,128], index: 6, kind: input, shape index: {}]
  %s7 = inlined_call_operand.vmem [shape: f32[1,128], index: 7, kind: input, shape index: {}]
  %s8 = inlined_call_operand.hbm [shape: f32[32,128], index: 8, kind: output, shape index: {}]
  %s9 = sld [smem:[#allocation0]]
  $region77: #{tpu_custom_call.1} parent=0
    _
  %s11 = ssub.s32 1, %s9
  %s12 = scalar_select 0, %s11, %s9
  $region1: #{tpu_custom_call.1} parent=0
    #allocation2 [shape = 'u8[16384]{0}', space=vmem, size = 0x4000, scoped, tag = 'input window, operand 0']
    #allocation3 [shape = 's32[2]{0}', space=sflag, size = 0x8, scoped, tag = 'scoped memory for tpu_custom_call.1']
    #allocation4 [shape = 's32[2]{0}', space=sflag, size = 0x8, scoped, tag = 'scoped memory for tpu_custom_call.1']
    #allocation5 [shape = 'u8[98304]{0}', space=vmem, size = 0x18000, scoped, tag = 'input window, operand 3, single buffered']
    #allocation6 [shape = 's32[1]{0}', space=sflag, size = 0x4, scoped, tag = 'scoped memory for tpu_custom_call.1']
    #allocation7 [shape = 'u8[98304]{0}', space=vmem, size = 0x18000, scoped, tag = 'input window, operand 6, single buffered']
    #allocation8 [shape = 'u8[16384]{0}', space=vmem, size = 0x4000, scoped, tag = 'output window, operand 0']
    %13 = vsyncpa [#allocation3], 0
    %s14 = scalar_lea.sflag [#allocation3], 1
    %15 = vsyncpa %s14, 0
    %16 = vsyncpa [#allocation6], 0
    %17 = vsyncpa [#allocation4], 0
    %s18 = scalar_lea.sflag [#allocation4], 1
    %19 = vsyncpa %s18, 0
    loop: start=0, step=1, limit=4
    $region2: #{tpu_custom_call.1} parent=1 // loop_pre_header
      _
    $region3: #{tpu_custom_call.1} parent=1 // loop_header
      %s21 = sphi 0, %s25
      %p22 = scmp.ge.s32.totalorder %s21, 4
      %s31 = sphi 0, %s33
      %s34 = sphi 0, %s31
      %s35 = sphi 0, %s34
      %s51 = sphi 0, %s35
      %s55 = sphi 0, %s55
      %s57 = sphi 0, %s55
      %s58 = sphi 0, %s57
      %s72 = sphi 0, %s58
      %s76 = sphi 0, %s76
      %s78 = sphi 0, %s76
      %s79 = sphi 0, %s78
      %s93 = sphi 0, %s79
      %s97 = sphi 0, %s97
      %s99 = sphi 0, %s97
      %s100 = sphi 0, %s99
      %s114 = sphi 0, %s100
      %s118 = sphi 0, %s118
      %s120 = sphi 0, %s118
      %s121 = sphi 0, %s120
      %s135 = sphi 0, %s121
      %s139 = sphi 0, %s139
      %s141 = sphi 0, %s139
      %s142 = sphi 0, %s141
      %s156 = sphi 0, %s142
      %s160 = sphi 0, %s160
      %s162 = sphi 0, %s160
      %s163 = sphi 0, %s162
      %s177 = sphi 0, %s163
      %s181 = sphi 0, %s181
      %s183 = sphi 0, %s181
      %s184 = sphi 0, %s183
      %s198 = sphi 0, %s184
      %s204 = sphi 0, %s206
      %s207 = sphi 0, %s204
      %s208 = sphi 0, %s207
      %s224 = sphi 0, %s208
    $region4: #{tpu_custom_call.1} parent=1 // loop_header_branch
      %24 = sbr.rel (%p22) target = $region8
    $region5: #{tpu_custom_call.1} parent=1 // loop_body
      %s26 = ssub.s32 %s21, 1
      %s27 = ssub.s32 %s21, 2
      %s28 = sadd.s32 %s21, 1
      %s29 = ssub.s32 %s21, %s28
      %p30 = scmp.eq.s32.totalorder %s29, 0
      %s32 = sadd.s32 %s31, 1
      %s33 = scalar_select %p30, %s31, %s32
      %p36 = pneg %p30
      %p37 = scmp.eq.s32.totalorder %s21, 1
      %p38 = por %p36, %p37
      %p39 = scmp.ne.s32.totalorder %s31, %s34
      %p40 = scmp.eq.s32.totalorder %s21, 0
      %p41 = por %p39, %p40
      %p42 = scmp.ne.s32.totalorder %s31, %s34
      %p43 = scmp.eq.s32.totalorder %s26, 1
      %p44 = por %p42, %p43
      %p45 = scmp.ne.s32.totalorder %s34, %s35
      %p46 = scmp.eq.s32.totalorder %s26, 0
      %p47 = por %p45, %p46
      %p48 = scmp.ne.s32.totalorder %s34, %s35
      %p49 = scmp.eq.s32.totalorder %s27, 1
      %p50 = por %p48, %p49
      %p52 = scmp.ne.s32.totalorder %s35, %s51
      %p53 = scmp.eq.s32.totalorder %s27, 0
      %p54 = por %p52, %p53
      %s56 = sadd.s32 %s55, 1
      %p59 = scmp.eq.s32.totalorder %s21, 1
      %p60 = scmp.ne.s32.totalorder %s55, %s57
      %p61 = scmp.eq.s32.totalorder %s21, 0
      %p62 = por %p60, %p61
      %p63 = scmp.ne.s32.totalorder %s55, %s57
      %p64 = scmp.eq.s32.totalorder %s26, 1
      %p65 = por %p63, %p64
      %p66 = scmp.ne.s32.totalorder %s57, %s58
      %p67 = scmp.eq.s32.totalorder %s26, 0
      %p68 = por %p66, %p67
      %p69 = scmp.ne.s32.totalorder %s57, %s58
      %p70 = scmp.eq.s32.totalorder %s27, 1
      %p71 = por %p69, %p70
      %p73 = scmp.ne.s32.totalorder %s58, %s72
      %p74 = scmp.eq.s32.totalorder %s27, 0
      %p75 = por %p73, %p74
      %s77 = sadd.s32 %s76, 1
      %p80 = scmp.eq.s32.totalorder %s21, 1
      %p81 = scmp.ne.s32.totalorder %s76, %s78
      %p82 = scmp.eq.s32.totalorder %s21, 0
      %p83 = por %p81, %p82
      %p84 = scmp.ne.s32.totalorder %s76, %s78
      %p85 = scmp.eq.s32.totalorder %s26, 1
      %p86 = por %p84, %p85
      %p87 = scmp.ne.s32.totalorder %s78, %s79
      %p88 = scmp.eq.s32.totalorder %s26, 0
      %p89 = por %p87, %p88
      %p90 = scmp.ne.s32.totalorder %s78, %s79
      %p91 = scmp.eq.s32.totalorder %s27, 1
      %p92 = por %p90, %p91
      %p94 = scmp.ne.s32.totalorder %s79, %s93
      %p95 = scmp.eq.s32.totalorder %s27, 0
      %p96 = por %p94, %p95
      %s98 = sadd.s32 %s97, 1
      %p101 = scmp.eq.s32.totalorder %s21, 1
      %p102 = scmp.ne.s32.totalorder %s97, %s99
      %p103 = scmp.eq.s32.totalorder %s21, 0
      %p104 = por %p102, %p103
      %p105 = scmp.ne.s32.totalorder %s97, %s99
      %p106 = scmp.eq.s32.totalorder %s26, 1
      %p107 = por %p105, %p106
      %p108 = scmp.ne.s32.totalorder %s99, %s100
      %p109 = scmp.eq.s32.totalorder %s26, 0
      %p110 = por %p108, %p109
      %p111 = scmp.ne.s32.totalorder %s99, %s100
      %p112 = scmp.eq.s32.totalorder %s27, 1
      %p113 = por %p111, %p112
      %p115 = scmp.ne.s32.totalorder %s100, %s114
      %p116 = scmp.eq.s32.totalorder %s27, 0
      %p117 = por %p115, %p116
      %s119 = sadd.s32 %s118, 1
      %p122 = scmp.eq.s32.totalorder %s21, 1
      %p123 = scmp.ne.s32.totalorder %s118, %s120
      %p124 = scmp.eq.s32.totalorder %s21, 0
      %p125 = por %p123, %p124
      %p126 = scmp.ne.s32.totalorder %s118, %s120
      %p127 = scmp.eq.s32.totalorder %s26, 1
      %p128 = por %p126, %p127
      %p129 = scmp.ne.s32.totalorder %s120, %s121
      %p130 = scmp.eq.s32.totalorder %s26, 0
      %p131 = por %p129, %p130
      %p132 = scmp.ne.s32.totalorder %s120, %s121
      %p133 = scmp.eq.s32.totalorder %s27, 1
      %p134 = por %p132, %p133
      %p136 = scmp.ne.s32.totalorder %s121, %s135
      %p137 = scmp.eq.s32.totalorder %s27, 0
      %p138 = por %p136, %p137
      %s140 = sadd.s32 %s139, 1
      %p143 = scmp.eq.s32.totalorder %s21, 1
      %p144 = scmp.ne.s32.totalorder %s139, %s141
      %p145 = scmp.eq.s32.totalorder %s21, 0
      %p146 = por %p144, %p145
      %p147 = scmp.ne.s32.totalorder %s139, %s141
      %p148 = scmp.eq.s32.totalorder %s26, 1
      %p149 = por %p147, %p148
      %p150 = scmp.ne.s32.totalorder %s141, %s142
      %p151 = scmp.eq.s32.totalorder %s26, 0
      %p152 = por %p150, %p151
      %p153 = scmp.ne.s32.totalorder %s141, %s142
      %p154 = scmp.eq.s32.totalorder %s27, 1
      %p155 = por %p153, %p154
      %p157 = scmp.ne.s32.totalorder %s142, %s156
      %p158 = scmp.eq.s32.totalorder %s27, 0
      %p159 = por %p157, %p158
      %s161 = sadd.s32 %s160, 1
      %p164 = scmp.eq.s32.totalorder %s21, 1
      %p165 = scmp.ne.s32.totalorder %s160, %s162
      %p166 = scmp.eq.s32.totalorder %s21, 0
      %p167 = por %p165, %p166
      %p168 = scmp.ne.s32.totalorder %s160, %s162
      %p169 = scmp.eq.s32.totalorder %s26, 1
      %p170 = por %p168, %p169
      %p171 = scmp.ne.s32.totalorder %s162, %s163
      %p172 = scmp.eq.s32.totalorder %s26, 0
      %p173 = por %p171, %p172
      %p174 = scmp.ne.s32.totalorder %s162, %s163
      %p175 = scmp.eq.s32.totalorder %s27, 1
      %p176 = por %p174, %p175
      %p178 = scmp.ne.s32.totalorder %s163, %s177
      %p179 = scmp.eq.s32.totalorder %s27, 0
      %p180 = por %p178, %p179
      %s182 = sadd.s32 %s181, 1
      %p185 = scmp.eq.s32.totalorder %s21, 1
      %p186 = scmp.ne.s32.totalorder %s181, %s183
      %p187 = scmp.eq.s32.totalorder %s21, 0
      %p188 = por %p186, %p187
      %p189 = scmp.ne.s32.totalorder %s181, %s183
      %p190 = scmp.eq.s32.totalorder %s26, 1
      %p191 = por %p189, %p190
      %p192 = scmp.ne.s32.totalorder %s183, %s184
      %p193 = scmp.eq.s32.totalorder %s26, 0
      %p194 = por %p192, %p193
      %p195 = scmp.ne.s32.totalorder %s183, %s184
      %p196 = scmp.eq.s32.totalorder %s27, 1
      %p197 = por %p195, %p196
      %p199 = scmp.ne.s32.totalorder %s184, %s198
      %p200 = scmp.eq.s32.totalorder %s27, 0
      %p201 = por %p199, %p200
      %s202 = ssub.s32 %s21, %s28
      %p203 = scmp.eq.s32.totalorder %s202, 0
      %s205 = sadd.s32 %s204, 1
      %s206 = scalar_select %p203, %s204, %s205
      %p209 = pneg %p203
      %p210 = scmp.eq.s32.totalorder %s21, 1
      %p211 = por %p209, %p210
      %p212 = scmp.ne.s32.totalorder %s204, %s207
      %p213 = scmp.eq.s32.totalorder %s21, 0
      %p214 = por %p212, %p213
      %p215 = scmp.ne.s32.totalorder %s204, %s207
      %p216 = scmp.eq.s32.totalorder %s26, 1
      %p217 = por %p215, %p216
      %p218 = scmp.ne.s32.totalorder %s207, %s208
      %p219 = scmp.eq.s32.totalorder %s26, 0
      %p220 = por %p218, %p219
      %p221 = scmp.ne.s32.totalorder %s207, %s208
      %p222 = scmp.eq.s32.totalorder %s27, 1
      %p223 = por %p221, %p222
      %p225 = scmp.ne.s32.totalorder %s208, %s224
      %p226 = scmp.eq.s32.totalorder %s27, 0
      %p227 = por %p225, %p226
      %p228 = scmp.le.s32.totalorder 1, %s21
      %p229 = scmp.lt.s32.totalorder %s21, 3
      %p230 = pnand %p228, %p229
      %p231 = pneg %p230
      // Predicated region
      $region9: #{tpu_custom_call.1} parent=5 // pred_check
        _
      $region10: #{tpu_custom_call.1} parent=5 // pred_check_branch
        %233 = sbr.rel (%p230) target = $region12
      $region11: #{tpu_custom_call.1} parent=5 // pred_region
        %s234 = ssub.s32 %s21, 1
        // Predicated region
        $region13: #{tpu_custom_call.1} parent=11 // pred_check
          %p235 = pneg %p68
        $region14: #{tpu_custom_call.1} parent=11 // pred_check_branch
          %237 = sbr.rel (%p235) target = $region16
        $region15: #{tpu_custom_call.1} parent=11 // pred_region
          _
        $region16: #{tpu_custom_call.1} parent=11 // pred_fallthru
          _
        // Predicated region
        $region17: #{tpu_custom_call.1} parent=11 // pred_check
          %p238 = pneg %p89
        $region18: #{tpu_custom_call.1} parent=11 // pred_check_branch
          %240 = sbr.rel (%p238) target = $region20
        $region19: #{tpu_custom_call.1} parent=11 // pred_region
          _
        $region20: #{tpu_custom_call.1} parent=11 // pred_fallthru
          _
        // Predicated region
        $region21: #{tpu_custom_call.1} parent=11 // pred_check
          %p241 = pneg %p110
        $region22: #{tpu_custom_call.1} parent=11 // pred_check_branch
          %243 = sbr.rel (%p241) target = $region24
        $region23: #{tpu_custom_call.1} parent=11 // pred_region
          %s245 = ssub.s32 3072, 3072
          %246 = vsyncadd [#allocation6], %s245
          %s247 = sshll.u32 [#allocation5], 4
          %s248 = int_to_ptr.vmem [resolvable:$true] %s247
          %253 = dma.hbm_to_vmem [thread:$0]  %s3, 3072, %s248, [#allocation6], 64, 64, 4
        $region24: #{tpu_custom_call.1} parent=11 // pred_fallthru
          _
        // Predicated region
        $region25: #{tpu_custom_call.1} parent=11 // pred_check
          %p254 = pneg %p131
        $region26: #{tpu_custom_call.1} parent=11 // pred_check_branch
          %256 = sbr.rel (%p254) target = $region28
        $region27: #{tpu_custom_call.1} parent=11 // pred_region
          _
        $region28: #{tpu_custom_call.1} parent=11 // pred_fallthru
          _
        // Predicated region
        $region29: #{tpu_custom_call.1} parent=11 // pred_check
          %p257 = pneg %p152
        $region30: #{tpu_custom_call.1} parent=11 // pred_check_branch
          %259 = sbr.rel (%p257) target = $region32
        $region31: #{tpu_custom_call.1} parent=11 // pred_region
          _
        $region32: #{tpu_custom_call.1} parent=11 // pred_fallthru
          _
        // Predicated region
        $region33: #{tpu_custom_call.1} parent=11 // pred_check
          %p260 = pneg %p173
        $region34: #{tpu_custom_call.1} parent=11 // pred_check_branch
          %262 = sbr.rel (%p260) target = $region36
        $region35: #{tpu_custom_call.1} parent=11 // pred_region
          %s264 = ssub.s32 3072, 3072
          %265 = vsyncadd [#allocation6], %s264
          %s266 = sshll.u32 [#allocation7], 4
          %s267 = int_to_ptr.vmem [resolvable:$true] %s266
          %272 = dma.hbm_to_vmem [thread:$0]  %s6, 3072, %s267, [#allocation6], 64, 64, 4
        $region36: #{tpu_custom_call.1} parent=11 // pred_fallthru
          _
        // Predicated region
        $region37: #{tpu_custom_call.1} parent=11 // pred_check
          %p273 = pneg %p194
        $region38: #{tpu_custom_call.1} parent=11 // pred_check_branch
          %275 = sbr.rel (%p273) target = $region40
        $region39: #{tpu_custom_call.1} parent=11 // pred_region
          _
        $region40: #{tpu_custom_call.1} parent=11 // pred_fallthru
          _
      $region12: #{tpu_custom_call.1} parent=5 // pred_fallthru
        _
      %p276 = scmp.lt.s32.totalorder %s21, 2
      // Predicated region
      $region41: #{tpu_custom_call.1} parent=5 // pred_check
        %p277 = pneg %p276
      $region42: #{tpu_custom_call.1} parent=5 // pred_check_branch
        %279 = sbr.rel (%p277) target = $region44
      $region43: #{tpu_custom_call.1} parent=5 // pred_region
        // Predicated region
        $region45: #{tpu_custom_call.1} parent=43 // pred_check
          %p280 = pneg %p41
        $region46: #{tpu_custom_call.1} parent=43 // pred_check_branch
          %282 = sbr.rel (%p280) target = $region48
        $region47: #{tpu_custom_call.1} parent=43 // pred_region
          %s283 = sand.u32 %s31, 1
          %s284 = scalar_lea.sflag [#allocation3], %s283
          %s285 = sand.u32 %s31, 1
          %s286 = smul.addr %s285, 16
          %s287 = scalar_lea.vmem [#allocation2], %s286
          %s288 = smul.u32 2, %s21
          %s290 = ssub.s32 256, 256
          %291 = vsyncadd %s284, %s290
          %s292 = smul.addr %s288, 128
          %s293 = scalar_lea.hbm %s0, %s292
          %s294 = sshll.u32 %s287, 4
          %s295 = int_to_ptr.vmem [resolvable:$true] %s294
          %300 = dma.hbm_to_vmem [thread:$0]  %s293, 256, %s295, %s284, 128, 128, 8
        $region48: #{tpu_custom_call.1} parent=43 // pred_fallthru
          _
      $region44: #{tpu_custom_call.1} parent=5 // pred_fallthru
        _
      %p301 = scmp.le.s32.totalorder 1, %s21
      %p302 = scmp.lt.s32.totalorder %s21, 3
      %p303 = pnand %p301, %p302
      %p304 = pneg %p303
      // Predicated region
      $region49: #{tpu_custom_call.1} parent=5 // pred_check
        _
      $region50: #{tpu_custom_call.1} parent=5 // pred_check_branch
        %306 = sbr.rel (%p303) target = $region52
      $region51: #{tpu_custom_call.1} parent=5 // pred_region
        %s307 = ssub.s32 %s21, 1
        %s308 = sand.u32 %s34, 1
        %s309 = scalar_lea.sflag [#allocation3], %s308
        %s310 = sand.u32 %s34, 1
        %s311 = smul.addr %s310, 16
        %s312 = scalar_lea.vmem [#allocation2], %s311
        // Predicated region
        $region53: #{tpu_custom_call.1} parent=51 // pred_check
          %p313 = pneg %p47
        $region54: #{tpu_custom_call.1} parent=51 // pred_check_branch
          %315 = sbr.rel (%p313) target = $region56
        $region55: #{tpu_custom_call.1} parent=51 // pred_region
          %316 = dma.done %s309, 256
        $region56: #{tpu_custom_call.1} parent=51 // pred_fallthru
          _
        // Predicated region
        $region57: #{tpu_custom_call.1} parent=51 // pred_check
          %p317 = pneg %p110
        $region58: #{tpu_custom_call.1} parent=51 // pred_check_branch
          %319 = sbr.rel (%p317) target = $region60
        $region59: #{tpu_custom_call.1} parent=51 // pred_region
          %320 = dma.done [#allocation6], 3072
        $region60: #{tpu_custom_call.1} parent=51 // pred_fallthru
          _
        // Predicated region
        $region61: #{tpu_custom_call.1} parent=51 // pred_check
          %p321 = pneg %p173
        $region62: #{tpu_custom_call.1} parent=51 // pred_check_branch
          %323 = sbr.rel (%p321) target = $region64
        $region63: #{tpu_custom_call.1} parent=51 // pred_region
          %324 = dma.done [#allocation6], 3072
        $region64: #{tpu_custom_call.1} parent=51 // pred_fallthru
          _
        %s325 = sand.u32 %s34, 1
        %s326 = scalar_lea.sflag [#allocation3], %s325
        %s327 = sand.u32 %s34, 1
        %s328 = smul.addr %s327, 16
        %s329 = scalar_lea.vmem [#allocation2], %s328
        %p330 = pneg %p47
        %p331 = pneg %p44
        %p332 = pneg %p68
        %p333 = pneg %p65
        %p334 = pneg %p89
        %p335 = pneg %p86
        %p336 = pneg %p110
        %p337 = pneg %p107
        %p338 = pneg %p131
        %p339 = pneg %p128
        %p340 = pneg %p152
        %p341 = pneg %p149
        %p342 = pneg %p173
        %p343 = pneg %p170
        %p344 = pneg %p194
        %p345 = pneg %p191
        %p346 = pneg %p220
        %p347 = pneg %p217
        %s348 = sand.u32 %s207, 1
        %s349 = scalar_lea.sflag [#allocation4], %s348
        %s350 = sand.u32 %s207, 1
        %s351 = smul.addr %s350, 16
        %s352 = scalar_lea.vmem [#allocation8], %s351
        %s353 = smul.u32 2, %s26
        %s354 = smul.u32 2, %s26
        %v356 = vld [vmem:[%s312] sm:$0xff]
        %v357 = vld [vmem:[%s312 + $0x8] sm:$0xff]
        %v358 = vlaneseq
        %v359 = vshrl.u32 %v358, 7
        %v360 = vadd.s32 %v359, 8
        %vm361 = vcmp.lt.s32.totalorder %v359, 0
        %v362 = vsub.s32 0, %v359
        %v363 = vsel %vm361, %v362, %v359
        %v364 = vshrl.u32 %v363, 4
        %v365 = vand.u32 %v363, 15
        %v366 = vsub.s32 0, %v365
        %v367 = vsel %vm361, %v366, %v365
        %vm368 = vcmp.lt.s32.totalorder %v360, 0
        %v369 = vsub.s32 0, %v360
        %v370 = vsel %vm368, %v369, %v360
        %v371 = vshrl.u32 %v370, 4
        %v372 = vand.u32 %v370, 15
        %v373 = vsub.s32 0, %v372
        %v374 = vsel %vm368, %v373, %v372
        %vm375 = vcmp.ne.s32.totalorder %v367, 0
        %vm376 = vcmp.ne.s32.totalorder %v374, 0
        %vm377 = vcmp.lt.s32.totalorder %v367, 0
        %vm378 = vcmp.lt.s32.totalorder %v374, 0
        %vm379 = vmand %vm377, %vm375
        %vm380 = vmand %vm378, %vm376
        %v381 = vadd.s32 %v367, 16
        %v382 = vadd.s32 %v374, 16
        %v383 = vsel %vm379, %v381, %v367
        %v384 = vsel %vm380, %v382, %v374
        %vm385 = vcmp.ne.s32.totalorder %v383, 0
        %vm386 = vcmp.ne.s32.totalorder %v384, 0
        %v387 = vsel %vm385, 1, 0
        %v388 = vsel %vm386, 1, 0
        %v389 = vcvt.s32.f32 %v387
        %v390 = vcvt.s32.f32 %v388
        %vm391 = vcmp.ne.s32.totalorder %v383, 15
        %vm392 = vcmp.ne.s32.totalorder %v384, 15
        %v393 = vsel %vm391, 1, 0
        %v394 = vsel %vm392, 1, 0
        %v395 = vcvt.s32.f32 %v393
        %v396 = vcvt.s32.f32 %v394
        %v397 = vld [vmem:[%s1] sm:$0x1]
        %v399 = vlaneseq
        %v400 = vshrl.u32 %v399, 7
        %v401 = vsub.s32 0, %v400
        %v402 = vrot.slane %v397, %v401
        %v404 = vmul.f32 %v356, %v402
        %v405 = vmul.f32 %v357, %v402
        %v406 = vld [vmem:[%s2] sm:$0x1]
        %v408 = vlaneseq
        %v409 = vshrl.u32 %v408, 7
        %v410 = vsub.s32 0, %v409
        %v411 = vrot.slane %v406, %v410
        %v413 = vadd.f32 %v404, %v411
        %v414 = vadd.f32 %v405, %v411
        %v415 = vmax.f32 %v413, 0.0
        %v416 = vmax.f32 %v414, 0.0
        %v417 = vrot.slane %v415, 7
        %v418 = vrot.slane %v416, 7
        %vm419 = vcmp.lt.s32.totalorder %v359, 1
        %v420 = vsel %vm419, %v417, %v418
        %v421 = vsel %vm419, %v418, %v417
        %v422 = vmul.f32 %v389, %v421
        %v423 = vmul.f32 %v390, %v420
        %v424 = vpack.c.bf16 %v423, %v422
        %v425 = vrot.slane %v415, 1
        %v426 = vrot.slane %v416, 1
        %vm427 = vcmp.lt.s32.totalorder %v359, 7
        %v428 = vsel %vm427, %v425, %v426
        %v429 = vsel %vm427, %v426, %v425
        %v430 = vmul.f32 %v395, %v428
        %v431 = vmul.f32 %v396, %v429
        %v432 = vpack.c.bf16 %v431, %v430
        %v433 = vpack.c.bf16 %v416, %v415
        %v434 = vld [vmem:[#allocation5] sm:$0xf]
        %v435 = vld [vmem:[#allocation5 + $0x4] sm:$0xf]
        %v436 = vld [vmem:[#allocation5 + $0x8] sm:$0xf]
        %v437 = vld [vmem:[#allocation5 + $0xc] sm:$0xf]
        %v438 = vld [vmem:[#allocation5 + $0x10] sm:$0xf]
        %v439 = vld [vmem:[#allocation5 + $0x14] sm:$0xf]
        %v440 = vld [vmem:[#allocation5 + $0x18] sm:$0xf]
        %v441 = vld [vmem:[#allocation5 + $0x1c] sm:$0xf]
        %v442 = vld [vmem:[#allocation5 + $0x20] sm:$0xf]
        %v443 = vld [vmem:[#allocation5 + $0x24] sm:$0xf]
        %v444 = vld [vmem:[#allocation5 + $0x28] sm:$0xf]
        %v445 = vld [vmem:[#allocation5 + $0x2c] sm:$0xf]
        %v446 = vld [vmem:[#allocation5 + $0x30] sm:$0xf]
        %v447 = vld [vmem:[#allocation5 + $0x34] sm:$0xf]
        %v448 = vld [vmem:[#allocation5 + $0x38] sm:$0xf]
        %v449 = vld [vmem:[#allocation5 + $0x3c] sm:$0xf]
        %v450 = vld [vmem:[#allocation5 + $0x40] sm:$0xf]
        %v451 = vld [vmem:[#allocation5 + $0x44] sm:$0xf]
        %v452 = vld [vmem:[#allocation5 + $0x48] sm:$0xf]
        %v453 = vld [vmem:[#allocation5 + $0x4c] sm:$0xf]
        %v454 = vld [vmem:[#allocation5 + $0x50] sm:$0xf]
        %v455 = vld [vmem:[#allocation5 + $0x54] sm:$0xf]
        %v456 = vld [vmem:[#allocation5 + $0x58] sm:$0xf]
        %v457 = vld [vmem:[#allocation5 + $0x5c] sm:$0xf]
        %v458 = vld [vmem:[#allocation5 + $0x60] sm:$0xf]
        %v459 = vld [vmem:[#allocation5 + $0x64] sm:$0xf]
        %v460 = vld [vmem:[#allocation5 + $0x68] sm:$0xf]
        %v461 = vld [vmem:[#allocation5 + $0x6c] sm:$0xf]
        %v462 = vld [vmem:[#allocation5 + $0x70] sm:$0xf]
        %v463 = vld [vmem:[#allocation5 + $0x74] sm:$0xf]
        %v464 = vld [vmem:[#allocation5 + $0x78] sm:$0xf]
        %v465 = vld [vmem:[#allocation5 + $0x7c] sm:$0xf]
        %v482 = vunpack.c.l.b16 %v450
        %v483 = vunpack.c.l.b16 %v451
        %v484 = vunpack.c.l.b16 %v452
        %v485 = vunpack.c.l.b16 %v453
        %v486 = vunpack.c.l.b16 %v454
        %v487 = vunpack.c.l.b16 %v455
        %v488 = vunpack.c.l.b16 %v456
        %v489 = vunpack.c.l.b16 %v457
        %v490 = vunpack.c.l.b16 %v458
        %v491 = vunpack.c.l.b16 %v459
        %v492 = vunpack.c.l.b16 %v460
        %v493 = vunpack.c.l.b16 %v461
        %v494 = vunpack.c.l.b16 %v462
        %v495 = vunpack.c.l.b16 %v463
        %v496 = vunpack.c.l.b16 %v464
        %v497 = vunpack.c.l.b16 %v465
        %v498 = vpack.c.b16 %v483, %v482
        %v499 = vpack.c.b16 %v485, %v484
        %v500 = vpack.c.b16 %v487, %v486
        %v501 = vpack.c.b16 %v489, %v488
        %v502 = vpack.c.b16 %v491, %v490
        %v503 = vpack.c.b16 %v493, %v492
        %v504 = vpack.c.b16 %v495, %v494
        %v505 = vpack.c.b16 %v497, %v496
        %514 = vmatprep.subr.bf16.mxu0 0
        %515 = vmatpush1.bf16.msra.mxu0 %v505
        %516 = vmatprep.subr.bf16.mxu0 0
        %517 = vmatpush1.bf16.msra.mxu0 %v504
        %518 = vmatprep.subr.bf16.mxu0 0
        %519 = vmatpush1.bf16.msra.mxu0 %v503
        %520 = vmatprep.subr.bf16.mxu0 0
        %521 = vmatpush1.bf16.msra.mxu0 %v502
        %522 = vmatprep.subr.bf16.mxu0 0
        %523 = vmatpush1.bf16.msra.mxu0 %v501
        %524 = vmatprep.subr.bf16.mxu0 0
        %525 = vmatpush1.bf16.msra.mxu0 %v500
        %526 = vmatprep.subr.bf16.mxu0 0
        %527 = vmatpush1.bf16.msra.mxu0 %v499
        %528 = vmatprep.subr.bf16.mxu0 0
        %529 = vmatpush1.bf16.msra.mxu0 %v498
        %530 = vmatprep.subr.bf16.mxu0 0
        %531 = vmatpush2.bf16.msra.mxu0 0
        %532 = vmatprep.subr.bf16.mxu0 0
        %533 = vmatpush2.bf16.msra.mxu0 0
        %534 = vmatprep.subr.bf16.mxu0 0
        %535 = vmatpush2.bf16.msra.mxu0 0
        %536 = vmatprep.subr.bf16.mxu0 0
        %537 = vmatpush2.bf16.msra.mxu0 0
        %538 = vmatprep.subr.bf16.mxu0 0
        %539 = vmatpush2.bf16.msra.mxu0 0
        %540 = vmatprep.subr.bf16.mxu0 0
        %541 = vmatpush2.bf16.msra.mxu0 0
        %542 = vmatprep.subr.bf16.mxu0 0
        %543 = vmatpush2.bf16.msra.mxu0 0
        %544 = vmatprep.subr.bf16.mxu0 0
        %545 = vmatpush2.bf16.msra.mxu0 0
        %546 = vmatprep.mubr.bf16.mxu0 0
        %547 = vmatmul.mubr.bf16.gmra.mxu0 %v433
        %v548 = vpop.f32.mrf.mxu0
        %v549 = vadd.f32 0.0, %v548
        %v550 = vpop.f32.mrf.mxu0
        %v551 = vpop.f32.mrf.mxu0
        %v552 = vadd.f32 0.0, %v551
        %v553 = vpop.f32.mrf.mxu0
        %554 = vdwg.mxu0
        %v571 = vunpack.c.l.b16 %v434
        %v572 = vunpack.c.l.b16 %v435
        %v573 = vunpack.c.l.b16 %v436
        %v574 = vunpack.c.l.b16 %v437
        %v575 = vunpack.c.l.b16 %v438
        %v576 = vunpack.c.l.b16 %v439
        %v577 = vunpack.c.l.b16 %v440
        %v578 = vunpack.c.l.b16 %v441
        %v579 = vunpack.c.l.b16 %v442
        %v580 = vunpack.c.l.b16 %v443
        %v581 = vunpack.c.l.b16 %v444
        %v582 = vunpack.c.l.b16 %v445
        %v583 = vunpack.c.l.b16 %v446
        %v584 = vunpack.c.l.b16 %v447
        %v585 = vunpack.c.l.b16 %v448
        %v586 = vunpack.c.l.b16 %v449
        %v587 = vpack.c.b16 %v572, %v571
        %v588 = vpack.c.b16 %v574, %v573
        %v589 = vpack.c.b16 %v576, %v575
        %v590 = vpack.c.b16 %v578, %v577
        %v591 = vpack.c.b16 %v580, %v579
        %v592 = vpack.c.b16 %v582, %v581
        %v593 = vpack.c.b16 %v584, %v583
        %v594 = vpack.c.b16 %v586, %v585
        %603 = vmatprep.subr.bf16.mxu0 0
        %604 = vmatpush1.bf16.msra.mxu0 %v594
        %605 = vmatprep.subr.bf16.mxu0 0
        %606 = vmatpush1.bf16.msra.mxu0 %v593
        %607 = vmatprep.subr.bf16.mxu0 0
        %608 = vmatpush1.bf16.msra.mxu0 %v592
        %609 = vmatprep.subr.bf16.mxu0 0
        %610 = vmatpush1.bf16.msra.mxu0 %v591
        %611 = vmatprep.subr.bf16.mxu0 0
        %612 = vmatpush1.bf16.msra.mxu0 %v590
        %613 = vmatprep.subr.bf16.mxu0 0
        %614 = vmatpush1.bf16.msra.mxu0 %v589
        %615 = vmatprep.subr.bf16.mxu0 0
        %616 = vmatpush1.bf16.msra.mxu0 %v588
        %617 = vmatprep.subr.bf16.mxu0 0
        %618 = vmatpush1.bf16.msra.mxu0 %v587
        %619 = vmatprep.subr.bf16.mxu0 0
        %620 = vmatpush2.bf16.msra.mxu0 0
        %621 = vmatprep.subr.bf16.mxu0 0
        %622 = vmatpush2.bf16.msra.mxu0 0
        %623 = vmatprep.subr.bf16.mxu0 0
        %624 = vmatpush2.bf16.msra.mxu0 0
        %625 = vmatprep.subr.bf16.mxu0 0
        %626 = vmatpush2.bf16.msra.mxu0 0
        %627 = vmatprep.subr.bf16.mxu0 0
        %628 = vmatpush2.bf16.msra.mxu0 0
        %629 = vmatprep.subr.bf16.mxu0 0
        %630 = vmatpush2.bf16.msra.mxu0 0
        %631 = vmatprep.subr.bf16.mxu0 0
        %632 = vmatpush2.bf16.msra.mxu0 0
        %633 = vmatprep.subr.bf16.mxu0 0
        %634 = vmatpush2.bf16.msra.mxu0 0
        %635 = vmatprep.mubr.bf16.mxu0 0
        %636 = vmatmul.mubr.bf16.gmra.mxu0 %v424
        %v637 = vpop.f32.mrf.mxu0
        %v638 = vadd.f32 %v549, %v637
        %v639 = vpop.f32.mrf.mxu0
        %v640 = vpop.f32.mrf.mxu0
        %v641 = vadd.f32 %v552, %v640
        %v642 = vpop.f32.mrf.mxu0
        %643 = vdwg.mxu0
        %v644 = vld [vmem:[#allocation5 + $0x80] sm:$0xf]
        %v645 = vld [vmem:[#allocation5 + $0x84] sm:$0xf]
        %v646 = vld [vmem:[#allocation5 + $0x88] sm:$0xf]
        %v647 = vld [vmem:[#allocation5 + $0x8c] sm:$0xf]
        %v648 = vld [vmem:[#allocation5 + $0x90] sm:$0xf]
        %v649 = vld [vmem:[#allocation5 + $0x94] sm:$0xf]
        %v650 = vld [vmem:[#allocation5 + $0x98] sm:$0xf]
        %v651 = vld [vmem:[#allocation5 + $0x9c] sm:$0xf]
        %v652 = vld [vmem:[#allocation5 + $0xa0] sm:$0xf]
        %v653 = vld [vmem:[#allocation5 + $0xa4] sm:$0xf]
        %v654 = vld [vmem:[#allocation5 + $0xa8] sm:$0xf]
        %v655 = vld [vmem:[#allocation5 + $0xac] sm:$0xf]
        %v656 = vld [vmem:[#allocation5 + $0xb0] sm:$0xf]
        %v657 = vld [vmem:[#allocation5 + $0xb4] sm:$0xf]
        %v658 = vld [vmem:[#allocation5 + $0xb8] sm:$0xf]
        %v659 = vld [vmem:[#allocation5 + $0xbc] sm:$0xf]
        %v676 = vunpack.c.l.b16 %v644
        %v677 = vunpack.c.l.b16 %v645
        %v678 = vunpack.c.l.b16 %v646
        %v679 = vunpack.c.l.b16 %v647
        %v680 = vunpack.c.l.b16 %v648
        %v681 = vunpack.c.l.b16 %v649
        %v682 = vunpack.c.l.b16 %v650
        %v683 = vunpack.c.l.b16 %v651
        %v684 = vunpack.c.l.b16 %v652
        %v685 = vunpack.c.l.b16 %v653
        %v686 = vunpack.c.l.b16 %v654
        %v687 = vunpack.c.l.b16 %v655
        %v688 = vunpack.c.l.b16 %v656
        %v689 = vunpack.c.l.b16 %v657
        %v690 = vunpack.c.l.b16 %v658
        %v691 = vunpack.c.l.b16 %v659
        %v692 = vpack.c.b16 %v677, %v676
        %v693 = vpack.c.b16 %v679, %v678
        %v694 = vpack.c.b16 %v681, %v680
        %v695 = vpack.c.b16 %v683, %v682
        %v696 = vpack.c.b16 %v685, %v684
        %v697 = vpack.c.b16 %v687, %v686
        %v698 = vpack.c.b16 %v689, %v688
        %v699 = vpack.c.b16 %v691, %v690
        %708 = vmatprep.subr.bf16.mxu0 0
        %709 = vmatpush1.bf16.msra.mxu0 %v699
        %710 = vmatprep.subr.bf16.mxu0 0
        %711 = vmatpush1.bf16.msra.mxu0 %v698
        %712 = vmatprep.subr.bf16.mxu0 0
        %713 = vmatpush1.bf16.msra.mxu0 %v697
        %714 = vmatprep.subr.bf16.mxu0 0
        %715 = vmatpush1.bf16.msra.mxu0 %v696
        %716 = vmatprep.subr.bf16.mxu0 0
        %717 = vmatpush1.bf16.msra.mxu0 %v695
        %718 = vmatprep.subr.bf16.mxu0 0
        %719 = vmatpush1.bf16.msra.mxu0 %v694
        %720 = vmatprep.subr.bf16.mxu0 0
        %721 = vmatpush1.bf16.msra.mxu0 %v693
        %722 = vmatprep.subr.bf16.mxu0 0
        %723 = vmatpush1.bf16.msra.mxu0 %v692
        %724 = vmatprep.subr.bf16.mxu0 0
        %725 = vmatpush2.bf16.msra.mxu0 0
        %726 = vmatprep.subr.bf16.mxu0 0
        %727 = vmatpush2.bf16.msra.mxu0 0
        %728 = vmatprep.subr.bf16.mxu0 0
        %729 = vmatpush2.bf16.msra.mxu0 0
        %730 = vmatprep.subr.bf16.mxu0 0
        %731 = vmatpush2.bf16.msra.mxu0 0
        %732 = vmatprep.subr.bf16.mxu0 0
        %733 = vmatpush2.bf16.msra.mxu0 0
        %734 = vmatprep.subr.bf16.mxu0 0
        %735 = vmatpush2.bf16.msra.mxu0 0
        %736 = vmatprep.subr.bf16.mxu0 0
        %737 = vmatpush2.bf16.msra.mxu0 0
        %738 = vmatprep.subr.bf16.mxu0 0
        %739 = vmatpush2.bf16.msra.mxu0 0
        %740 = vmatprep.mubr.bf16.mxu0 0
        %741 = vmatmul.mubr.bf16.gmra.mxu0 %v432
        %v742 = vpop.f32.mrf.mxu0
        %v743 = vadd.f32 0.0, %v742
        %v744 = vpop.f32.mrf.mxu0
        %v745 = vpop.f32.mrf.mxu0
        %v746 = vadd.f32 0.0, %v745
        %v747 = vpop.f32.mrf.mxu0
        %748 = vdwg.mxu0
        %v749 = vadd.f32 %v638, %v743
        %v750 = vadd.f32 %v641, %v746
        %v751 = vld [vmem:[%s4] sm:$0x1]
        %v753 = vlaneseq
        %v754 = vshrl.u32 %v753, 7
        %v755 = vsub.s32 0, %v754
        %v756 = vrot.slane %v751, %v755
        %v758 = vmul.f32 %v749, %v756
        %v759 = vmul.f32 %v750, %v756
        %v760 = vld [vmem:[%s5] sm:$0x1]
        %v762 = vlaneseq
        %v763 = vshrl.u32 %v762, 7
        %v764 = vsub.s32 0, %v763
        %v765 = vrot.slane %v760, %v764
        %v767 = vadd.f32 %v758, %v765
        %v768 = vadd.f32 %v759, %v765
        %v769 = vmax.f32 %v767, 0.0
        %v770 = vmax.f32 %v768, 0.0
        %v771 = vrot.slane %v769, 7
        %v772 = vrot.slane %v770, 7
        %v773 = vsel %vm419, %v771, %v772
        %v774 = vsel %vm419, %v772, %v771
        %v775 = vmul.f32 %v389, %v774
        %v776 = vmul.f32 %v390, %v773
        %v777 = vpack.c.bf16 %v776, %v775
        %v778 = vrot.slane %v769, 1
        %v779 = vrot.slane %v770, 1
        %v780 = vsel %vm427, %v778, %v779
        %v781 = vsel %vm427, %v779, %v778
        %v782 = vmul.f32 %v395, %v780
        %v783 = vmul.f32 %v396, %v781
        %v784 = vpack.c.bf16 %v783, %v782
        %v785 = vpack.c.bf16 %v770, %v769
        %v786 = vld [vmem:[#allocation7] sm:$0xf]
        %v787 = vld [vmem:[#allocation7 + $0x4] sm:$0xf]
        %v788 = vld [vmem:[#allocation7 + $0x8] sm:$0xf]
        %v789 = vld [vmem:[#allocation7 + $0xc] sm:$0xf]
        %v790 = vld [vmem:[#allocation7 + $0x10] sm:$0xf]
        %v791 = vld [vmem:[#allocation7 + $0x14] sm:$0xf]
        %v792 = vld [vmem:[#allocation7 + $0x18] sm:$0xf]
        %v793 = vld [vmem:[#allocation7 + $0x1c] sm:$0xf]
        %v794 = vld [vmem:[#allocation7 + $0x20] sm:$0xf]
        %v795 = vld [vmem:[#allocation7 + $0x24] sm:$0xf]
        %v796 = vld [vmem:[#allocation7 + $0x28] sm:$0xf]
        %v797 = vld [vmem:[#allocation7 + $0x2c] sm:$0xf]
        %v798 = vld [vmem:[#allocation7 + $0x30] sm:$0xf]
        %v799 = vld [vmem:[#allocation7 + $0x34] sm:$0xf]
        %v800 = vld [vmem:[#allocation7 + $0x38] sm:$0xf]
        %v801 = vld [vmem:[#allocation7 + $0x3c] sm:$0xf]
        %v802 = vld [vmem:[#allocation7 + $0x40] sm:$0xf]
        %v803 = vld [vmem:[#allocation7 + $0x44] sm:$0xf]
        %v804 = vld [vmem:[#allocation7 + $0x48] sm:$0xf]
        %v805 = vld [vmem:[#allocation7 + $0x4c] sm:$0xf]
        %v806 = vld [vmem:[#allocation7 + $0x50] sm:$0xf]
        %v807 = vld [vmem:[#allocation7 + $0x54] sm:$0xf]
        %v808 = vld [vmem:[#allocation7 + $0x58] sm:$0xf]
        %v809 = vld [vmem:[#allocation7 + $0x5c] sm:$0xf]
        %v810 = vld [vmem:[#allocation7 + $0x60] sm:$0xf]
        %v811 = vld [vmem:[#allocation7 + $0x64] sm:$0xf]
        %v812 = vld [vmem:[#allocation7 + $0x68] sm:$0xf]
        %v813 = vld [vmem:[#allocation7 + $0x6c] sm:$0xf]
        %v814 = vld [vmem:[#allocation7 + $0x70] sm:$0xf]
        %v815 = vld [vmem:[#allocation7 + $0x74] sm:$0xf]
        %v816 = vld [vmem:[#allocation7 + $0x78] sm:$0xf]
        %v817 = vld [vmem:[#allocation7 + $0x7c] sm:$0xf]
        %v834 = vunpack.c.l.b16 %v802
        %v835 = vunpack.c.l.b16 %v803
        %v836 = vunpack.c.l.b16 %v804
        %v837 = vunpack.c.l.b16 %v805
        %v838 = vunpack.c.l.b16 %v806
        %v839 = vunpack.c.l.b16 %v807
        %v840 = vunpack.c.l.b16 %v808
        %v841 = vunpack.c.l.b16 %v809
        %v842 = vunpack.c.l.b16 %v810
        %v843 = vunpack.c.l.b16 %v811
        %v844 = vunpack.c.l.b16 %v812
        %v845 = vunpack.c.l.b16 %v813
        %v846 = vunpack.c.l.b16 %v814
        %v847 = vunpack.c.l.b16 %v815
        %v848 = vunpack.c.l.b16 %v816
        %v849 = vunpack.c.l.b16 %v817
        %v850 = vpack.c.b16 %v835, %v834
        %v851 = vpack.c.b16 %v837, %v836
        %v852 = vpack.c.b16 %v839, %v838
        %v853 = vpack.c.b16 %v841, %v840
        %v854 = vpack.c.b16 %v843, %v842
        %v855 = vpack.c.b16 %v845, %v844
        %v856 = vpack.c.b16 %v847, %v846
        %v857 = vpack.c.b16 %v849, %v848
        %866 = vmatprep.subr.bf16.mxu0 0
        %867 = vmatpush1.bf16.msra.mxu0 %v857
        %868 = vmatprep.subr.bf16.mxu0 0
        %869 = vmatpush1.bf16.msra.mxu0 %v856
        %870 = vmatprep.subr.bf16.mxu0 0
        %871 = vmatpush1.bf16.msra.mxu0 %v855
        %872 = vmatprep.subr.bf16.mxu0 0
        %873 = vmatpush1.bf16.msra.mxu0 %v854
        %874 = vmatprep.subr.bf16.mxu0 0
        %875 = vmatpush1.bf16.msra.mxu0 %v853
        %876 = vmatprep.subr.bf16.mxu0 0
        %877 = vmatpush1.bf16.msra.mxu0 %v852
        %878 = vmatprep.subr.bf16.mxu0 0
        %879 = vmatpush1.bf16.msra.mxu0 %v851
        %880 = vmatprep.subr.bf16.mxu0 0
        %881 = vmatpush1.bf16.msra.mxu0 %v850
        %882 = vmatprep.subr.bf16.mxu0 0
        %883 = vmatpush2.bf16.msra.mxu0 0
        %884 = vmatprep.subr.bf16.mxu0 0
        %885 = vmatpush2.bf16.msra.mxu0 0
        %886 = vmatprep.subr.bf16.mxu0 0
        %887 = vmatpush2.bf16.msra.mxu0 0
        %888 = vmatprep.subr.bf16.mxu0 0
        %889 = vmatpush2.bf16.msra.mxu0 0
        %890 = vmatprep.subr.bf16.mxu0 0
        %891 = vmatpush2.bf16.msra.mxu0 0
        %892 = vmatprep.subr.bf16.mxu0 0
        %893 = vmatpush2.bf16.msra.mxu0 0
        %894 = vmatprep.subr.bf16.mxu0 0
        %895 = vmatpush2.bf16.msra.mxu0 0
        %896 = vmatprep.subr.bf16.mxu0 0
        %897 = vmatpush2.bf16.msra.mxu0 0
        %898 = vmatprep.mubr.bf16.mxu0 0
        %899 = vmatmul.mubr.bf16.gmra.mxu0 %v785
        %v900 = vpop.f32.mrf.mxu0
        %v901 = vadd.f32 0.0, %v900
        %v902 = vpop.f32.mrf.mxu0
        %v903 = vpop.f32.mrf.mxu0
        %v904 = vadd.f32 0.0, %v903
        %v905 = vpop.f32.mrf.mxu0
        %906 = vdwg.mxu0
        %v923 = vunpack.c.l.b16 %v786
        %v924 = vunpack.c.l.b16 %v787
        %v925 = vunpack.c.l.b16 %v788
        %v926 = vunpack.c.l.b16 %v789
        %v927 = vunpack.c.l.b16 %v790
        %v928 = vunpack.c.l.b16 %v791
        %v929 = vunpack.c.l.b16 %v792
        %v930 = vunpack.c.l.b16 %v793
        %v931 = vunpack.c.l.b16 %v794
        %v932 = vunpack.c.l.b16 %v795
        %v933 = vunpack.c.l.b16 %v796
        %v934 = vunpack.c.l.b16 %v797
        %v935 = vunpack.c.l.b16 %v798
        %v936 = vunpack.c.l.b16 %v799
        %v937 = vunpack.c.l.b16 %v800
        %v938 = vunpack.c.l.b16 %v801
        %v939 = vpack.c.b16 %v924, %v923
        %v940 = vpack.c.b16 %v926, %v925
        %v941 = vpack.c.b16 %v928, %v927
        %v942 = vpack.c.b16 %v930, %v929
        %v943 = vpack.c.b16 %v932, %v931
        %v944 = vpack.c.b16 %v934, %v933
        %v945 = vpack.c.b16 %v936, %v935
        %v946 = vpack.c.b16 %v938, %v937
        %955 = vmatprep.subr.bf16.mxu0 0
        %956 = vmatpush1.bf16.msra.mxu0 %v946
        %957 = vmatprep.subr.bf16.mxu0 0
        %958 = vmatpush1.bf16.msra.mxu0 %v945
        %959 = vmatprep.subr.bf16.mxu0 0
        %960 = vmatpush1.bf16.msra.mxu0 %v944
        %961 = vmatprep.subr.bf16.mxu0 0
        %962 = vmatpush1.bf16.msra.mxu0 %v943
        %963 = vmatprep.subr.bf16.mxu0 0
        %964 = vmatpush1.bf16.msra.mxu0 %v942
        %965 = vmatprep.subr.bf16.mxu0 0
        %966 = vmatpush1.bf16.msra.mxu0 %v941
        %967 = vmatprep.subr.bf16.mxu0 0
        %968 = vmatpush1.bf16.msra.mxu0 %v940
        %969 = vmatprep.subr.bf16.mxu0 0
        %970 = vmatpush1.bf16.msra.mxu0 %v939
        %971 = vmatprep.subr.bf16.mxu0 0
        %972 = vmatpush2.bf16.msra.mxu0 0
        %973 = vmatprep.subr.bf16.mxu0 0
        %974 = vmatpush2.bf16.msra.mxu0 0
        %975 = vmatprep.subr.bf16.mxu0 0
        %976 = vmatpush2.bf16.msra.mxu0 0
        %977 = vmatprep.subr.bf16.mxu0 0
        %978 = vmatpush2.bf16.msra.mxu0 0
        %979 = vmatprep.subr.bf16.mxu0 0
        %980 = vmatpush2.bf16.msra.mxu0 0
        %981 = vmatprep.subr.bf16.mxu0 0
        %982 = vmatpush2.bf16.msra.mxu0 0
        %983 = vmatprep.subr.bf16.mxu0 0
        %984 = vmatpush2.bf16.msra.mxu0 0
        %985 = vmatprep.subr.bf16.mxu0 0
        %986 = vmatpush2.bf16.msra.mxu0 0
        %987 = vmatprep.mubr.bf16.mxu0 0
        %988 = vmatmul.mubr.bf16.gmra.mxu0 %v777
        %v989 = vpop.f32.mrf.mxu0
        %v990 = vadd.f32 %v901, %v989
        %v991 = vpop.f32.mrf.mxu0
        %v992 = vpop.f32.mrf.mxu0
        %v993 = vadd.f32 %v904, %v992
        %v994 = vpop.f32.mrf.mxu0
        %995 = vdwg.mxu0
        %v996 = vld [vmem:[#allocation7 + $0x80] sm:$0xf]
        %v997 = vld [vmem:[#allocation7 + $0x84] sm:$0xf]
        %v998 = vld [vmem:[#allocation7 + $0x88] sm:$0xf]
        %v999 = vld [vmem:[#allocation7 + $0x8c] sm:$0xf]
        %v1000 = vld [vmem:[#allocation7 + $0x90] sm:$0xf]
        %v1001 = vld [vmem:[#allocation7 + $0x94] sm:$0xf]
        %v1002 = vld [vmem:[#allocation7 + $0x98] sm:$0xf]
        %v1003 = vld [vmem:[#allocation7 + $0x9c] sm:$0xf]
        %v1004 = vld [vmem:[#allocation7 + $0xa0] sm:$0xf]
        %v1005 = vld [vmem:[#allocation7 + $0xa4] sm:$0xf]
        %v1006 = vld [vmem:[#allocation7 + $0xa8] sm:$0xf]
        %v1007 = vld [vmem:[#allocation7 + $0xac] sm:$0xf]
        %v1008 = vld [vmem:[#allocation7 + $0xb0] sm:$0xf]
        %v1009 = vld [vmem:[#allocation7 + $0xb4] sm:$0xf]
        %v1010 = vld [vmem:[#allocation7 + $0xb8] sm:$0xf]
        %v1011 = vld [vmem:[#allocation7 + $0xbc] sm:$0xf]
        %v1028 = vunpack.c.l.b16 %v996
        %v1029 = vunpack.c.l.b16 %v997
        %v1030 = vunpack.c.l.b16 %v998
        %v1031 = vunpack.c.l.b16 %v999
        %v1032 = vunpack.c.l.b16 %v1000
        %v1033 = vunpack.c.l.b16 %v1001
        %v1034 = vunpack.c.l.b16 %v1002
        %v1035 = vunpack.c.l.b16 %v1003
        %v1036 = vunpack.c.l.b16 %v1004
        %v1037 = vunpack.c.l.b16 %v1005
        %v1038 = vunpack.c.l.b16 %v1006
        %v1039 = vunpack.c.l.b16 %v1007
        %v1040 = vunpack.c.l.b16 %v1008
        %v1041 = vunpack.c.l.b16 %v1009
        %v1042 = vunpack.c.l.b16 %v1010
        %v1043 = vunpack.c.l.b16 %v1011
        %v1044 = vpack.c.b16 %v1029, %v1028
        %v1045 = vpack.c.b16 %v1031, %v1030
        %v1046 = vpack.c.b16 %v1033, %v1032
        %v1047 = vpack.c.b16 %v1035, %v1034
        %v1048 = vpack.c.b16 %v1037, %v1036
        %v1049 = vpack.c.b16 %v1039, %v1038
        %v1050 = vpack.c.b16 %v1041, %v1040
        %v1051 = vpack.c.b16 %v1043, %v1042
        %1060 = vmatprep.subr.bf16.mxu0 0
        %1061 = vmatpush1.bf16.msra.mxu0 %v1051
        %1062 = vmatprep.subr.bf16.mxu0 0
        %1063 = vmatpush1.bf16.msra.mxu0 %v1050
        %1064 = vmatprep.subr.bf16.mxu0 0
        %1065 = vmatpush1.bf16.msra.mxu0 %v1049
        %1066 = vmatprep.subr.bf16.mxu0 0
        %1067 = vmatpush1.bf16.msra.mxu0 %v1048
        %1068 = vmatprep.subr.bf16.mxu0 0
        %1069 = vmatpush1.bf16.msra.mxu0 %v1047
        %1070 = vmatprep.subr.bf16.mxu0 0
        %1071 = vmatpush1.bf16.msra.mxu0 %v1046
        %1072 = vmatprep.subr.bf16.mxu0 0
        %1073 = vmatpush1.bf16.msra.mxu0 %v1045
        %1074 = vmatprep.subr.bf16.mxu0 0
        %1075 = vmatpush1.bf16.msra.mxu0 %v1044
        %1076 = vmatprep.subr.bf16.mxu0 0
        %1077 = vmatpush2.bf16.msra.mxu0 0
        %1078 = vmatprep.subr.bf16.mxu0 0
        %1079 = vmatpush2.bf16.msra.mxu0 0
        %1080 = vmatprep.subr.bf16.mxu0 0
        %1081 = vmatpush2.bf16.msra.mxu0 0
        %1082 = vmatprep.subr.bf16.mxu0 0
        %1083 = vmatpush2.bf16.msra.mxu0 0
        %1084 = vmatprep.subr.bf16.mxu0 0
        %1085 = vmatpush2.bf16.msra.mxu0 0
        %1086 = vmatprep.subr.bf16.mxu0 0
        %1087 = vmatpush2.bf16.msra.mxu0 0
        %1088 = vmatprep.subr.bf16.mxu0 0
        %1089 = vmatpush2.bf16.msra.mxu0 0
        %1090 = vmatprep.subr.bf16.mxu0 0
        %1091 = vmatpush2.bf16.msra.mxu0 0
        %1092 = vmatprep.mubr.bf16.mxu0 0
        %1093 = vmatmul.mubr.bf16.gmra.mxu0 %v784
        %v1094 = vpop.f32.mrf.mxu0
        %v1095 = vadd.f32 0.0, %v1094
        %v1096 = vpop.f32.mrf.mxu0
        %v1097 = vpop.f32.mrf.mxu0
        %v1098 = vadd.f32 0.0, %v1097
        %v1099 = vpop.f32.mrf.mxu0
        %1100 = vdwg.mxu0
        %v1101 = vadd.f32 %v990, %v1095
        %v1102 = vadd.f32 %v993, %v1098
        %v1103 = vadd.f32 %v356, %v1101
        %v1104 = vadd.f32 %v357, %v1102
        %v1105 = vld [vmem:[%s7] sm:$0x1]
        %v1107 = vlaneseq
        %v1108 = vshrl.u32 %v1107, 7
        %v1109 = vsub.s32 0, %v1108
        %v1110 = vrot.slane %v1105, %v1109
        %v1112 = vadd.f32 %v1103, %v1110
        %v1113 = vadd.f32 %v1104, %v1110
        %1114 = vst [vmem:[%s352] sm:$0xff] %v1112
        %1115 = vst [vmem:[%s352 + $0x8] sm:$0xff] %v1113
        %s1116 = sand.u32 %s207, 1
        %s1117 = scalar_lea.sflag [#allocation4], %s1116
        %s1118 = sand.u32 %s207, 1
        %s1119 = smul.addr %s1118, 16
        %s1120 = scalar_lea.vmem [#allocation8], %s1119
        // Predicated region
        $region65: #{tpu_custom_call.1} parent=51 // pred_check
          %p1121 = pneg %p217
        $region66: #{tpu_custom_call.1} parent=51 // pred_check_branch
          %1123 = sbr.rel (%p1121) target = $region68
        $region67: #{tpu_custom_call.1} parent=51 // pred_region
          %s1124 = smul.u32 2, %s26
          %s1126 = ssub.s32 256, 256
          %1127 = vsyncadd %s1117, %s1126
          %s1128 = smul.addr %s1124, 128
          %s1129 = scalar_lea.hbm %s8, %s1128
          %s1130 = sshll.u32 %s1120, 4
          %s1131 = int_to_ptr.vmem [resolvable:$true] %s1130
          %1136 = dma.vmem_to_hbm [thread:$0]  %s1131, 256, %s1129, %s1117, 128, 128, 8
        $region68: #{tpu_custom_call.1} parent=51 // pred_fallthru
          _
      $region52: #{tpu_custom_call.1} parent=5 // pred_fallthru
        _
      %p1137 = scmp.le.s32.totalorder 2, %s21
      // Predicated region
      $region69: #{tpu_custom_call.1} parent=5 // pred_check
        %p1138 = pneg %p1137
      $region70: #{tpu_custom_call.1} parent=5 // pred_check_branch
        %1140 = sbr.rel (%p1138) target = $region72
      $region71: #{tpu_custom_call.1} parent=5 // pred_region
        %s1141 = ssub.s32 %s21, 2
        // Predicated region
        $region73: #{tpu_custom_call.1} parent=71 // pred_check
          %p1142 = pneg %p223
        $region74: #{tpu_custom_call.1} parent=71 // pred_check_branch
          %1144 = sbr.rel (%p1142) target = $region76
        $region75: #{tpu_custom_call.1} parent=71 // pred_region
          %s1145 = sand.u32 %s208, 1
          %s1146 = scalar_lea.sflag [#allocation4], %s1145
          %s1147 = sand.u32 %s208, 1
          %s1148 = smul.addr %s1147, 16
          %s1149 = scalar_lea.vmem [#allocation8], %s1148
          %1150 = dma.done %s1146, 256
        $region76: #{tpu_custom_call.1} parent=71 // pred_fallthru
          _
      $region72: #{tpu_custom_call.1} parent=5 // pred_fallthru
        _
    $region6: #{tpu_custom_call.1} parent=1 // loop_footer
      %s25 = sadd.s32 1, %s21
    $region7: #{tpu_custom_call.1} parent=1 // loop_footer_branch
      %20 = sbr.rel target = $region3
    $region8: #{tpu_custom_call.1} parent=1 // loop_exit
      _
    %1151 = vsyncpa [#allocation3], 1
    %s1152 = scalar_lea.sflag [#allocation3], 1
    %1153 = vsyncpa %s1152, 1
    %1154 = vsyncpa [#allocation6], 1
    %1155 = vsyncpa [#allocation4], 1
    %s1156 = scalar_lea.sflag [#allocation4], 1
    %1157 = vsyncpa %s1156, 1

</llo_original>
